<compile_context>
chip_gen: v6e
topology: v6e:2x2x1
jax: 0.10.0
libtpu: 0.0.40
codegen_flags: <defaults>
</compile_context>

<pallas_src>
import functools

import jax
import jax.numpy as jnp
from jax.experimental import pallas as pl
from jax.experimental.pallas import tpu as pltpu


def _round_up(x, m):
    return ((x + m - 1) // m) * m


def gradcam_kernel(x_ref, wf_ref, bf_ref, wc_ref, bc_ref, mask_ref,
                   out_ref, sel_ref, *, wp, ts):
    # x_ref   : (1, 1, Cin, ts + halo)  flat zero-padded rows (halo'd spatial window)
    # wf_ref  : (9, Cf, Cin)            per-tap 3x3 feature-conv weights
    # bf_ref  : (Cf, 1)                 feature-conv bias (column)
    # wc_ref  : (K, Cf)                 classifier 1x1-conv weights (transposed)
    # bc_ref  : (K, 1)                  classifier bias (column)
    # mask_ref: (1, ts)                 0.0 valid / -inf for padded-column positions
    # out_ref : (1, 1, K, 1)            per-tile partial global max
    # sel_ref : (1, K, ts)              selected_out tile (padded-row flat layout)
    xw = x_ref[0, 0]                                   # (Cin, ts + halo)
    lane_len = xw.shape[1]

    # 3x3 conv as 9 accumulating matmuls; tap (ky, kx) is a static lane shift
    # d = ky*Wp + kx of the flattened padded rows (XLU roll -> free slot).
    feat = None
    for t in range(9):
        ky, kx = divmod(t, 3)
        d = ky * wp + kx
        if d == 0:
            slab = xw[:, :ts]
        else:
            slab = pltpu.roll(xw, shift=lane_len - d, axis=1)[:, :ts]   # (Cin, ts)
        contrib = jnp.dot(wf_ref[t], slab, preferred_element_type=jnp.float32)
        feat = contrib if feat is None else feat + contrib
    feat = jnp.maximum(feat + bf_ref[...], 0.0)        # (Cf, ts)  ReLU

    sel = jnp.dot(wc_ref[...], feat,
                  preferred_element_type=jnp.float32) + bc_ref[...]     # (K, ts)
    sel_ref[0] = sel                                   # lane-dense unmasked stores

    # fused per-tile global max-pool (junk columns / tail padding masked to -inf)
    out_ref[0, 0] = jnp.max(sel + mask_ref[...], axis=1, keepdims=True)


@functools.partial(jax.jit, static_argnames=("tile_s_cap",))
def gradcam_forward(x_nchw, wf, bf, wc, bc, *, tile_s_cap=16384):
    """x_nchw: (N, Cin, H, W) f32.  Returns (out (N,K), selected_out (N,K,H,W))."""
    N, Cin, H, W = x_nchw.shape
    Cf = wf.shape[-1]
    K = wc.shape[-1]
    Hp, Wp = H + 2, W + 2

    # Compute on the "padded-row" flat grid: output position (y, x) lives at
    # p = y*Wp + x, so every 3x3 tap (ky, kx) is the SAME flat lane shift
    # d = ky*Wp + kx of the flattened zero-padded image for every output position.
    # Columns x in [W, Wp) are junk (masked out of the max, sliced off afterwards).
    l_grid = H * Wp
    halo = _round_up(2 * Wp + 2, 128)           # max tap shift, rounded to lane tiles
    cap = max(128, (tile_s_cap // 128) * 128)
    tile_s = _round_up(l_grid, 128) if l_grid <= cap else cap
    num_r = pl.cdiv(l_grid, tile_s)
    l_pad = num_r * tile_s

    # Flatten the zero-padded image (the ONLY data-sized wrapper pass; ~1.3-1.6x of
    # the raw input vs ~9.25x for the old im2col) and cut halo'd per-tile windows.
    x_pad = jnp.pad(x_nchw, ((0, 0), (0, 0), (1, 1), (1, 1)))
    x_flat = x_pad.reshape(N, Cin, Hp * Wp)
    x_flat = jnp.pad(x_flat, ((0, 0), (0, 0), (0, l_pad + halo - Hp * Wp)))
    if num_r == 1:
        x_win = x_flat[:, None]                                  # (N, 1, Cin, tile+halo)
    else:
        x_win = jnp.stack(
            [x_flat[:, :, r * tile_s: r * tile_s + tile_s + halo]
             for r in range(num_r)], axis=1)                     # (N, R, Cin, tile+halo)

    # -inf additive mask for flat positions that are junk columns or tail padding.
    p = jnp.arange(l_pad)
    valid = (p < l_grid) & ((p % Wp) < W)
    mask_add = jnp.where(valid, 0.0, -jnp.inf).astype(jnp.float32)[None, :]  # (1, l_pad)

    # Per-tap weights (Cf, Cin); tap order t = ky*3 + kx matches shift d = ky*Wp + kx.
    wf_k = jnp.transpose(wf, (0, 1, 3, 2)).reshape(9, Cf, Cin)
    bf_c = bf.reshape(Cf, 1)
    wc_t = wc.T                                                   # (K, Cf)
    bc_c = bc.reshape(K, 1)

    out_part, sel_flat = pl.pallas_call(
        functools.partial(gradcam_kernel, wp=Wp, ts=tile_s),
        out_shape=(
            jax.ShapeDtypeStruct((N, num_r, K, 1), jnp.float32),   # partial maxes
            jax.ShapeDtypeStruct((N, K, l_pad), jnp.float32),      # CAM maps (flat)
        ),
        grid=(N, num_r),
        in_specs=[
            pl.BlockSpec((1, 1, Cin, tile_s + halo), lambda n, r: (n, r, 0, 0)),
            pl.BlockSpec((9, Cf, Cin), lambda n, r: (0, 0, 0)),
            pl.BlockSpec((Cf, 1), lambda n, r: (0, 0)),
            pl.BlockSpec((K, Cf), lambda n, r: (0, 0)),
            pl.BlockSpec((K, 1), lambda n, r: (0, 0)),
            pl.BlockSpec((1, tile_s), lambda n, r: (0, r)),
        ],
        out_specs=(
            pl.BlockSpec((1, 1, K, 1), lambda n, r: (n, r, 0, 0)),
            pl.BlockSpec((1, K, tile_s), lambda n, r: (n, 0, r)),
        ),
        compiler_params=pltpu.CompilerParams(
            # both axes are genuinely parallel (per-tile partial maxes, no revisits):
            # v7x can shard spatial tiles across its two TCs even when N == 1.
            dimension_semantics=("parallel", "parallel"),
            vmem_limit_bytes=48 * 1024 * 1024,   # usage is a few MB/step; 48 MiB is
                                                 # safe on v7x (64 MiB) and v5e/v6e.
        ),
    )(x_win, wf_k, bf_c, wc_t, bc_c, mask_add)

    out = jnp.max(out_part[:, :, :, 0], axis=1)                    # (N, K)
    selected_out = sel_flat[:, :, :l_grid].reshape(N, K, H, Wp)[:, :, :, :W]
    return out, selected_out


def reference_forward(x, wf, bf, wc, bc):
    """Pure-JAX reference (lax convolutions) for a sanity check."""
    dn = ("NCHW", "OIHW", "NCHW")
    wf_oihw = jnp.transpose(wf, (3, 2, 0, 1))                  # (Cf, Cin, 3, 3)
    feat = jax.lax.conv_general_dilated(x, wf_oihw, (1, 1), "SAME",
                                        dimension_numbers=dn)
    feat = jnp.maximum(feat + bf.reshape(1, -1, 1, 1), 0.0)
    wc_oihw = wc.T.reshape(wc.shape[1], wc.shape[0], 1, 1)     # (K, Cf, 1, 1)
    sel = jax.lax.conv_general_dilated(feat, wc_oihw, (1, 1), "VALID",
                                       dimension_numbers=dn) + bc.reshape(1, -1, 1, 1)
    out = jnp.max(sel, axis=(2, 3))
    return out, sel


if __name__ == "__main__":
    # Small shapes consistent with the module's forward: x is an NCHW image batch.
    N, Cin, H, W = 2, 4, 16, 16
    Cf, K = 8, 8  # feature channels, number of classes

    key = jax.random.PRNGKey(0)
    kx_, kwf, kbf, kwc, kbc = jax.random.split(key, 5)

    x = jax.random.normal(kx_, (N, Cin, H, W), dtype=jnp.float32)
    wf = jax.random.normal(kwf, (3, 3, Cin, Cf), dtype=jnp.float32) * 0.1
    bf = jax.random.normal(kbf, (Cf,), dtype=jnp.float32) * 0.1
    wc = jax.random.normal(kwc, (Cf, K), dtype=jnp.float32) * 0.1
    bc = jax.random.normal(kbc, (K,), dtype=jnp.float32) * 0.1

    # tile_s_cap=128 -> three spatial tiles over the H*(W+2)=288 flat positions,
    # exercising the halo'd windows, the -inf column/tail masking and the per-tile
    # partial-max outputs that keep both grid axes "parallel".
    out, selected_out = gradcam_forward(x, wf, bf, wc, bc, tile_s_cap=128)
    jax.block_until_ready((out, selected_out))

    assert out.shape == (N, K)
    assert selected_out.shape == (N, K, H, W)

    ref_out, ref_sel = reference_forward(x, wf, bf, wc, bc)
    assert jnp.allclose(out, ref_out, atol=1e-3, rtol=1e-3)
    assert jnp.allclose(selected_out, ref_sel, atol=1e-3, rtol=1e-3)

    # Also exercise the default large-tile config (single tile per image here).
    out2, sel2 = gradcam_forward(x, wf, bf, wc, bc)
    jax.block_until_ready((out2, sel2))
    assert jnp.allclose(out2, ref_out, atol=1e-3, rtol=1e-3)
    assert jnp.allclose(sel2, ref_sel, atol=1e-3, rtol=1e-3)

    # TODO(synk): the hook machinery (register_forward_hook / register_hook gradient
    # capture) is autodiff bookkeeping, not forward compute; the forward tuple
    # (out, selected_out) is reproduced exactly.
    print("KERNEL_OK")
</pallas_src>

<mosaic_0001>
module attributes {stable_mosaic.version = 11 : i64} {
  func.func @gradcam_kernel(%arg0: i32, %arg1: i32, %arg2: memref<1x1x4x256xf32, #tpu.memory_space<vmem>>, %arg3: memref<9x8x4xf32, #tpu.memory_space<vmem>>, %arg4: memref<8x1xf32, #tpu.memory_space<vmem>>, %arg5: memref<8x8xf32, #tpu.memory_space<vmem>>, %arg6: memref<8x1xf32, #tpu.memory_space<vmem>>, %arg7: memref<1x128xf32, #tpu.memory_space<vmem>>, %arg8: memref<1x1x8x1xf32, #tpu.memory_space<vmem>>, %arg9: memref<1x8x128xf32, #tpu.memory_space<vmem>>) attributes {dimension_semantics = [#tpu.dimension_semantics<parallel>, #tpu.dimension_semantics<parallel>], iteration_bounds = array<i64: 2, 3>, scalar_prefetch = 0 : i64, scratch_operands = 0 : i64, tpu.core_type = #tpu.core_type<tc>, window_params = [{transform_indices = @transform_0, window_bounds = array<i64: 1, 1, 4, 256>}, {pipeline_mode = #tpu.pipeline_mode<synchronous>, transform_indices = @transform_1, window_bounds = array<i64: 9, 8, 4>}, {pipeline_mode = #tpu.pipeline_mode<synchronous>, transform_indices = @transform_2, window_bounds = array<i64: 8, 1>}, {pipeline_mode = #tpu.pipeline_mode<synchronous>, transform_indices = @transform_3, window_bounds = array<i64: 8, 8>}, {pipeline_mode = #tpu.pipeline_mode<synchronous>, transform_indices = @transform_4, window_bounds = array<i64: 8, 1>}, {transform_indices = @transform_5, window_bounds = array<i64: 1, 128>}, {transform_indices = @transform_6, window_bounds = array<i64: 1, 1, 8, 1>}, {transform_indices = @transform_7, window_bounds = array<i64: 1, 8, 128>}]} {
    %c0 = arith.constant 0 : index
    %c0_0 = arith.constant 0 : index
    %c0_1 = arith.constant 0 : index
    %c0_2 = arith.constant 0 : index
    %0 = vector.load %arg2[%c0, %c0_0, %c0_1, %c0_2] : memref<1x1x4x256xf32, #tpu.memory_space<vmem>>, vector<1x1x4x256xf32>
    %1 = vector.shape_cast %0 : vector<1x1x4x256xf32> to vector<4x256xf32>
    %2 = vector.extract_strided_slice %1 {offsets = [0, 0], sizes = [4, 128], strides = [1, 1]} : vector<4x256xf32> to vector<4x128xf32>
    %c0_3 = arith.constant 0 : index
    %c0_4 = arith.constant 0 : index
    %c0_5 = arith.constant 0 : index
    %3 = vector.load %arg3[%c0_3, %c0_4, %c0_5] : memref<9x8x4xf32, #tpu.memory_space<vmem>>, vector<1x8x4xf32>
    %4 = vector.shape_cast %3 : vector<1x8x4xf32> to vector<8x4xf32>
    %cst = arith.constant dense<0.000000e+00> : vector<8x128xf32>
    %5 = tpu.matmul %4, %2, %cst {dimension_numbers = #tpu.dot_dimension_numbers<[1], [0], [0], [1], [0, 0, 1, 1], [], []>} : vector<8x4xf32>, vector<4x128xf32>, vector<8x128xf32> -> vector<8x128xf32>
    %c255_i32 = arith.constant 255 : i32
    %6 = tpu.dynamic_rotate %1 by %c255_i32 dim 1 : vector<4x256xf32>, i32 -> vector<4x256xf32>
    %7 = vector.extract_strided_slice %6 {offsets = [0, 0], sizes = [4, 128], strides = [1, 1]} : vector<4x256xf32> to vector<4x128xf32>
    %c1 = arith.constant 1 : index
    %c0_6 = arith.constant 0 : index
    %c0_7 = arith.constant 0 : index
    %8 = vector.load %arg3[%c1, %c0_6, %c0_7] : memref<9x8x4xf32, #tpu.memory_space<vmem>>, vector<1x8x4xf32>
    %9 = vector.shape_cast %8 : vector<1x8x4xf32> to vector<8x4xf32>
    %cst_8 = arith.constant dense<0.000000e+00> : vector<8x128xf32>
    %10 = tpu.matmul %9, %7, %cst_8 {dimension_numbers = #tpu.dot_dimension_numbers<[1], [0], [0], [1], [0, 0, 1, 1], [], []>} : vector<8x4xf32>, vector<4x128xf32>, vector<8x128xf32> -> vector<8x128xf32>
    %11 = arith.addf %5, %10 : vector<8x128xf32>
    %c254_i32 = arith.constant 254 : i32
    %12 = tpu.dynamic_rotate %1 by %c254_i32 dim 1 : vector<4x256xf32>, i32 -> vector<4x256xf32>
    %13 = vector.extract_strided_slice %12 {offsets = [0, 0], sizes = [4, 128], strides = [1, 1]} : vector<4x256xf32> to vector<4x128xf32>
    %c2 = arith.constant 2 : index
    %c0_9 = arith.constant 0 : index
    %c0_10 = arith.constant 0 : index
    %14 = vector.load %arg3[%c2, %c0_9, %c0_10] : memref<9x8x4xf32, #tpu.memory_space<vmem>>, vector<1x8x4xf32>
    %15 = vector.shape_cast %14 : vector<1x8x4xf32> to vector<8x4xf32>
    %cst_11 = arith.constant dense<0.000000e+00> : vector<8x128xf32>
    %16 = tpu.matmul %15, %13, %cst_11 {dimension_numbers = #tpu.dot_dimension_numbers<[1], [0], [0], [1], [0, 0, 1, 1], [], []>} : vector<8x4xf32>, vector<4x128xf32>, vector<8x128xf32> -> vector<8x128xf32>
    %17 = arith.addf %11, %16 : vector<8x128xf32>
    %c238_i32 = arith.constant 238 : i32
    %18 = tpu.dynamic_rotate %1 by %c238_i32 dim 1 : vector<4x256xf32>, i32 -> vector<4x256xf32>
    %19 = vector.extract_strided_slice %18 {offsets = [0, 0], sizes = [4, 128], strides = [1, 1]} : vector<4x256xf32> to vector<4x128xf32>
    %c3 = arith.constant 3 : index
    %c0_12 = arith.constant 0 : index
    %c0_13 = arith.constant 0 : index
    %20 = vector.load %arg3[%c3, %c0_12, %c0_13] : memref<9x8x4xf32, #tpu.memory_space<vmem>>, vector<1x8x4xf32>
    %21 = vector.shape_cast %20 : vector<1x8x4xf32> to vector<8x4xf32>
    %cst_14 = arith.constant dense<0.000000e+00> : vector<8x128xf32>
    %22 = tpu.matmul %21, %19, %cst_14 {dimension_numbers = #tpu.dot_dimension_numbers<[1], [0], [0], [1], [0, 0, 1, 1], [], []>} : vector<8x4xf32>, vector<4x128xf32>, vector<8x128xf32> -> vector<8x128xf32>
    %23 = arith.addf %17, %22 : vector<8x128xf32>
    %c237_i32 = arith.constant 237 : i32
    %24 = tpu.dynamic_rotate %1 by %c237_i32 dim 1 : vector<4x256xf32>, i32 -> vector<4x256xf32>
    %25 = vector.extract_strided_slice %24 {offsets = [0, 0], sizes = [4, 128], strides = [1, 1]} : vector<4x256xf32> to vector<4x128xf32>
    %c4 = arith.constant 4 : index
    %c0_15 = arith.constant 0 : index
    %c0_16 = arith.constant 0 : index
    %26 = vector.load %arg3[%c4, %c0_15, %c0_16] : memref<9x8x4xf32, #tpu.memory_space<vmem>>, vector<1x8x4xf32>
    %27 = vector.shape_cast %26 : vector<1x8x4xf32> to vector<8x4xf32>
    %cst_17 = arith.constant dense<0.000000e+00> : vector<8x128xf32>
    %28 = tpu.matmul %27, %25, %cst_17 {dimension_numbers = #tpu.dot_dimension_numbers<[1], [0], [0], [1], [0, 0, 1, 1], [], []>} : vector<8x4xf32>, vector<4x128xf32>, vector<8x128xf32> -> vector<8x128xf32>
    %29 = arith.addf %23, %28 : vector<8x128xf32>
    %c236_i32 = arith.constant 236 : i32
    %30 = tpu.dynamic_rotate %1 by %c236_i32 dim 1 : vector<4x256xf32>, i32 -> vector<4x256xf32>
    %31 = vector.extract_strided_slice %30 {offsets = [0, 0], sizes = [4, 128], strides = [1, 1]} : vector<4x256xf32> to vector<4x128xf32>
    %c5 = arith.constant 5 : index
    %c0_18 = arith.constant 0 : index
    %c0_19 = arith.constant 0 : index
    %32 = vector.load %arg3[%c5, %c0_18, %c0_19] : memref<9x8x4xf32, #tpu.memory_space<vmem>>, vector<1x8x4xf32>
    %33 = vector.shape_cast %32 : vector<1x8x4xf32> to vector<8x4xf32>
    %cst_20 = arith.constant dense<0.000000e+00> : vector<8x128xf32>
    %34 = tpu.matmul %33, %31, %cst_20 {dimension_numbers = #tpu.dot_dimension_numbers<[1], [0], [0], [1], [0, 0, 1, 1], [], []>} : vector<8x4xf32>, vector<4x128xf32>, vector<8x128xf32> -> vector<8x128xf32>
    %35 = arith.addf %29, %34 : vector<8x128xf32>
    %c220_i32 = arith.constant 220 : i32
    %36 = tpu.dynamic_rotate %1 by %c220_i32 dim 1 : vector<4x256xf32>, i32 -> vector<4x256xf32>
    %37 = vector.extract_strided_slice %36 {offsets = [0, 0], sizes = [4, 128], strides = [1, 1]} : vector<4x256xf32> to vector<4x128xf32>
    %c6 = arith.constant 6 : index
    %c0_21 = arith.constant 0 : index
    %c0_22 = arith.constant 0 : index
    %38 = vector.load %arg3[%c6, %c0_21, %c0_22] : memref<9x8x4xf32, #tpu.memory_space<vmem>>, vector<1x8x4xf32>
    %39 = vector.shape_cast %38 : vector<1x8x4xf32> to vector<8x4xf32>
    %cst_23 = arith.constant dense<0.000000e+00> : vector<8x128xf32>
    %40 = tpu.matmul %39, %37, %cst_23 {dimension_numbers = #tpu.dot_dimension_numbers<[1], [0], [0], [1], [0, 0, 1, 1], [], []>} : vector<8x4xf32>, vector<4x128xf32>, vector<8x128xf32> -> vector<8x128xf32>
    %41 = arith.addf %35, %40 : vector<8x128xf32>
    %c219_i32 = arith.constant 219 : i32
    %42 = tpu.dynamic_rotate %1 by %c219_i32 dim 1 : vector<4x256xf32>, i32 -> vector<4x256xf32>
    %43 = vector.extract_strided_slice %42 {offsets = [0, 0], sizes = [4, 128], strides = [1, 1]} : vector<4x256xf32> to vector<4x128xf32>
    %c7 = arith.constant 7 : index
    %c0_24 = arith.constant 0 : index
    %c0_25 = arith.constant 0 : index
    %44 = vector.load %arg3[%c7, %c0_24, %c0_25] : memref<9x8x4xf32, #tpu.memory_space<vmem>>, vector<1x8x4xf32>
    %45 = vector.shape_cast %44 : vector<1x8x4xf32> to vector<8x4xf32>
    %cst_26 = arith.constant dense<0.000000e+00> : vector<8x128xf32>
    %46 = tpu.matmul %45, %43, %cst_26 {dimension_numbers = #tpu.dot_dimension_numbers<[1], [0], [0], [1], [0, 0, 1, 1], [], []>} : vector<8x4xf32>, vector<4x128xf32>, vector<8x128xf32> -> vector<8x128xf32>
    %47 = arith.addf %41, %46 : vector<8x128xf32>
    %c218_i32 = arith.constant 218 : i32
    %48 = tpu.dynamic_rotate %1 by %c218_i32 dim 1 : vector<4x256xf32>, i32 -> vector<4x256xf32>
    %49 = vector.extract_strided_slice %48 {offsets = [0, 0], sizes = [4, 128], strides = [1, 1]} : vector<4x256xf32> to vector<4x128xf32>
    %c8 = arith.constant 8 : index
    %c0_27 = arith.constant 0 : index
    %c0_28 = arith.constant 0 : index
    %50 = vector.load %arg3[%c8, %c0_27, %c0_28] : memref<9x8x4xf32, #tpu.memory_space<vmem>>, vector<1x8x4xf32>
    %51 = vector.shape_cast %50 : vector<1x8x4xf32> to vector<8x4xf32>
    %cst_29 = arith.constant dense<0.000000e+00> : vector<8x128xf32>
    %52 = tpu.matmul %51, %49, %cst_29 {dimension_numbers = #tpu.dot_dimension_numbers<[1], [0], [0], [1], [0, 0, 1, 1], [], []>} : vector<8x4xf32>, vector<4x128xf32>, vector<8x128xf32> -> vector<8x128xf32>
    %53 = arith.addf %47, %52 : vector<8x128xf32>
    %c0_30 = arith.constant 0 : index
    %c0_31 = arith.constant 0 : index
    %54 = vector.load %arg4[%c0_30, %c0_31] : memref<8x1xf32, #tpu.memory_space<vmem>>, vector<8x1xf32>
    %55 = vector.broadcast %54 : vector<8x1xf32> to vector<8x128xf32>
    %56 = arith.addf %53, %55 : vector<8x128xf32>
    %cst_32 = arith.constant 0.000000e+00 : f32
    %57 = vector.broadcast %cst_32 : f32 to vector<8x128xf32>
    %58 = arith.maximumf %56, %57 : vector<8x128xf32>
    %c0_33 = arith.constant 0 : index
    %c0_34 = arith.constant 0 : index
    %59 = vector.load %arg5[%c0_33, %c0_34] : memref<8x8xf32, #tpu.memory_space<vmem>>, vector<8x8xf32>
    %cst_35 = arith.constant dense<0.000000e+00> : vector<8x128xf32>
    %60 = tpu.matmul %59, %58, %cst_35 {dimension_numbers = #tpu.dot_dimension_numbers<[1], [0], [0], [1], [0, 0, 1, 1], [], []>} : vector<8x8xf32>, vector<8x128xf32>, vector<8x128xf32> -> vector<8x128xf32>
    %c0_36 = arith.constant 0 : index
    %c0_37 = arith.constant 0 : index
    %61 = vector.load %arg6[%c0_36, %c0_37] : memref<8x1xf32, #tpu.memory_space<vmem>>, vector<8x1xf32>
    %62 = vector.broadcast %61 : vector<8x1xf32> to vector<8x128xf32>
    %63 = arith.addf %60, %62 : vector<8x128xf32>
    %c0_38 = arith.constant 0 : index
    %c0_39 = arith.constant 0 : index
    %c0_40 = arith.constant 0 : index
    %64 = vector.load %arg9[%c0_38, %c0_39, %c0_40] : memref<1x8x128xf32, #tpu.memory_space<vmem>>, vector<1x8x128xf32>
    %65 = vector.shape_cast %64 : vector<1x8x128xf32> to vector<8x128xf32>
    %66 = vector.shape_cast %63 : vector<8x128xf32> to vector<1x8x128xf32>
    tpu.vector_store %arg9[%c0_38, %c0_39, %c0_40], %66 {strides = array<i32>} : memref<1x8x128xf32, #tpu.memory_space<vmem>>, vector<1x8x128xf32>,
    %c0_41 = arith.constant 0 : index
    %c0_42 = arith.constant 0 : index
    %67 = vector.load %arg7[%c0_41, %c0_42] : memref<1x128xf32, #tpu.memory_space<vmem>>, vector<1x128xf32>
    %68 = vector.broadcast %67 : vector<1x128xf32> to vector<8x128xf32>
    %69 = arith.addf %63, %68 : vector<8x128xf32>
    %cst_43 = arith.constant dense<0xFF800000> : vector<8xf32>
    %70 = vector.multi_reduction <maximumf>, %69, %cst_43 [1] : vector<8x128xf32> to vector<8xf32>
    %71 = vector.shape_cast %70 : vector<8xf32> to vector<8x1xf32>
    %c0_44 = arith.constant 0 : index
    %c0_45 = arith.constant 0 : index
    %c0_46 = arith.constant 0 : index
    %c0_47 = arith.constant 0 : index
    %72 = vector.load %arg8[%c0_44, %c0_45, %c0_46, %c0_47] : memref<1x1x8x1xf32, #tpu.memory_space<vmem>>, vector<1x1x8x1xf32>
    %73 = vector.shape_cast %72 : vector<1x1x8x1xf32> to vector<8x1xf32>
    %74 = vector.shape_cast %71 : vector<8x1xf32> to vector<1x1x8x1xf32>
    tpu.vector_store %arg8[%c0_44, %c0_45, %c0_46, %c0_47], %74 {strides = array<i32>} : memref<1x1x8x1xf32, #tpu.memory_space<vmem>>, vector<1x1x8x1xf32>,
    return
  }
  func.func @transform_0(%arg0: i32, %arg1: i32) -> (i32, i32, i32, i32) {
    %c0_i32 = arith.constant 0 : i32
    %c0_i32_0 = arith.constant 0 : i32
    %c0_i32_1 = arith.constant 0 : i32
    return %arg0, %arg1, %c0_i32, %c0_i32_0 : i32, i32, i32, i32
  }
  func.func @transform_1(%arg0: i32, %arg1: i32) -> (i32, i32, i32) {
    %c0_i32 = arith.constant 0 : i32
    %c0_i32_0 = arith.constant 0 : i32
    %c0_i32_1 = arith.constant 0 : i32
    %c0_i32_2 = arith.constant 0 : i32
    return %c0_i32, %c0_i32_0, %c0_i32_1 : i32, i32, i32
  }
  func.func @transform_2(%arg0: i32, %arg1: i32) -> (i32, i32) {
    %c0_i32 = arith.constant 0 : i32
    %c0_i32_0 = arith.constant 0 : i32
    %c0_i32_1 = arith.constant 0 : i32
    return %c0_i32, %c0_i32_0 : i32, i32
  }
  func.func @transform_3(%arg0: i32, %arg1: i32) -> (i32, i32) {
    %c0_i32 = arith.constant 0 : i32
    %c0_i32_0 = arith.constant 0 : i32
    %c0_i32_1 = arith.constant 0 : i32
    return %c0_i32, %c0_i32_0 : i32, i32
  }
  func.func @transform_4(%arg0: i32, %arg1: i32) -> (i32, i32) {
    %c0_i32 = arith.constant 0 : i32
    %c0_i32_0 = arith.constant 0 : i32
    %c0_i32_1 = arith.constant 0 : i32
    return %c0_i32, %c0_i32_0 : i32, i32
  }
  func.func @transform_5(%arg0: i32, %arg1: i32) -> (i32, i32) {
    %c0_i32 = arith.constant 0 : i32
    %c0_i32_0 = arith.constant 0 : i32
    return %c0_i32, %arg1 : i32, i32
  }
  func.func @transform_6(%arg0: i32, %arg1: i32) -> (i32, i32, i32, i32) {
    %c0_i32 = arith.constant 0 : i32
    %c0_i32_0 = arith.constant 0 : i32
    %c0_i32_1 = arith.constant 0 : i32
    return %arg0, %arg1, %c0_i32, %c0_i32_0 : i32, i32, i32, i32
  }
  func.func @transform_7(%arg0: i32, %arg1: i32) -> (i32, i32, i32) {
    %c0_i32 = arith.constant 0 : i32
    %c0_i32_0 = arith.constant 0 : i32
    return %arg0, %c0_i32, %arg1 : i32, i32, i32
  }
}

</mosaic_0001>

<llo_original>
// kernel: gradcam_forward.1
$region0: #{gradcam_forward.1}
  #allocation0 [shape = 'u32[]', space=smem, size = 0x4, offset = 0x4, fixed_abs, tag = 'smem constant byte address 0x4 - core index']
  #allocation1 [shape = 'u32[144,128]{1,0:T(1,128)}', space=vmem, size = 0x12000, scoped, tag = 'internal scratch']
  %s0 = inlined_call_operand.vmem [shape: f32[2,3,4,256], index: 0, kind: input, shape index: {}]
  %s1 = inlined_call_operand.vmem [shape: f32[9,8,4], index: 1, kind: input, shape index: {}]
  %s2 = inlined_call_operand.vmem [shape: f32[8,1], index: 2, kind: input, shape index: {}]
  %s3 = inlined_call_operand.vmem [shape: f32[8,8], index: 3, kind: input, shape index: {}]
  %s4 = inlined_call_operand.vmem [shape: f32[8,1], index: 4, kind: input, shape index: {}]
  %s5 = inlined_call_operand.vmem [shape: f32[1,384], index: 5, kind: input, shape index: {}]
  %s6 = inlined_call_operand.vmem [shape: f32[2,3,8,1], index: 6, kind: output, shape index: {0}]
  %s7 = inlined_call_operand.vmem [shape: f32[2,8,384], index: 7, kind: output, shape index: {1}]
  %8 = xla_tuple %s6, %s7
  %s9 = sld [smem:[#allocation0]]
  $region65: #{gradcam_forward.1} parent=0
    _
  %s11 = ssub.s32 1, %s9
  %s12 = scalar_select 0, %s11, %s9
  loop: start=0, step=1, limit=8
  $region2: #{gradcam_forward.1} parent=0 // loop_pre_header
    _
  $region3: #{gradcam_forward.1} parent=0 // loop_header
    %s14 = sphi 0, %s18
    %p15 = scmp.ge.s32.totalorder %s14, 8
    %s21 = sphi 0, %s33
    %s22 = sphi 0, %s29
    %s23 = sphi 0, %s21
    %s24 = sphi 0, %s22
    %s25 = sphi 0, %s23
    %s26 = sphi 0, %s24
    %s38 = sphi 0, %s40
    %s41 = sphi 0, %s38
    %s42 = sphi 0, %s41
    %s58 = sphi 0, %s42
    %s62 = sphi 0, %s62
    %s64 = sphi 0, %s62
    %s65 = sphi 0, %s64
    %s79 = sphi 0, %s65
    %s83 = sphi 0, %s83
    %s85 = sphi 0, %s83
    %s86 = sphi 0, %s85
    %s100 = sphi 0, %s86
    %s104 = sphi 0, %s104
    %s106 = sphi 0, %s104
    %s107 = sphi 0, %s106
    %s121 = sphi 0, %s107
    %s125 = sphi 0, %s125
    %s127 = sphi 0, %s125
    %s128 = sphi 0, %s127
    %s142 = sphi 0, %s128
    %s148 = sphi 0, %s150
    %s151 = sphi 0, %s148
    %s152 = sphi 0, %s151
    %s168 = sphi 0, %s152
    %s176 = sphi 0, %s178
    %s179 = sphi 0, %s176
    %s180 = sphi 0, %s179
    %s196 = sphi 0, %s180
    %s204 = sphi 0, %s206
    %s207 = sphi 0, %s204
    %s208 = sphi 0, %s207
    %s224 = sphi 0, %s208
  $region4: #{gradcam_forward.1} parent=0 // loop_header_branch
    %17 = sbr.rel (%p15) target = $region8
  $region5: #{gradcam_forward.1} parent=0 // loop_body
    %s19 = ssub.s32 %s14, 1
    %s20 = ssub.s32 %s14, 2
    %s27 = sadd.s32 1, %s22
    %p28 = scmp.ge.s32.totalorder %s27, 3
    %s29 = scalar_select %p28, 0, %s27
    %s30 = sadd.s32 1, %s21
    %s31 = scalar_select %p28, %s30, %s21
    %p32 = scmp.ge.s32.totalorder %s31, 2
    %s33 = scalar_select %p32, 0, %s31
    %s34 = ssub.s32 %s21, %s33
    %s35 = ssub.s32 %s22, %s29
    %s36 = sor.u32 %s34, %s35
    %p37 = scmp.eq.s32.totalorder %s36, 0
    %s39 = sadd.s32 %s38, 1
    %s40 = scalar_select %p37, %s38, %s39
    %p43 = pneg %p37
    %p44 = scmp.eq.s32.totalorder %s14, 5
    %p45 = por %p43, %p44
    %p46 = scmp.ne.s32.totalorder %s38, %s41
    %p47 = scmp.eq.s32.totalorder %s14, 0
    %p48 = por %p46, %p47
    %p49 = scmp.ne.s32.totalorder %s38, %s41
    %p50 = scmp.eq.s32.totalorder %s19, 5
    %p51 = por %p49, %p50
    %p52 = scmp.ne.s32.totalorder %s41, %s42
    %p53 = scmp.eq.s32.totalorder %s19, 0
    %p54 = por %p52, %p53
    %p55 = scmp.ne.s32.totalorder %s41, %s42
    %p56 = scmp.eq.s32.totalorder %s20, 5
    %p57 = por %p55, %p56
    %p59 = scmp.ne.s32.totalorder %s42, %s58
    %p60 = scmp.eq.s32.totalorder %s20, 0
    %p61 = por %p59, %p60
    %s63 = sadd.s32 %s62, 1
    %p66 = scmp.eq.s32.totalorder %s14, 5
    %p67 = scmp.ne.s32.totalorder %s62, %s64
    %p68 = scmp.eq.s32.totalorder %s14, 0
    %p69 = por %p67, %p68
    %p70 = scmp.ne.s32.totalorder %s62, %s64
    %p71 = scmp.eq.s32.totalorder %s19, 5
    %p72 = por %p70, %p71
    %p73 = scmp.ne.s32.totalorder %s64, %s65
    %p74 = scmp.eq.s32.totalorder %s19, 0
    %p75 = por %p73, %p74
    %p76 = scmp.ne.s32.totalorder %s64, %s65
    %p77 = scmp.eq.s32.totalorder %s20, 5
    %p78 = por %p76, %p77
    %p80 = scmp.ne.s32.totalorder %s65, %s79
    %p81 = scmp.eq.s32.totalorder %s20, 0
    %p82 = por %p80, %p81
    %s84 = sadd.s32 %s83, 1
    %p87 = scmp.eq.s32.totalorder %s14, 5
    %p88 = scmp.ne.s32.totalorder %s83, %s85
    %p89 = scmp.eq.s32.totalorder %s14, 0
    %p90 = por %p88, %p89
    %p91 = scmp.ne.s32.totalorder %s83, %s85
    %p92 = scmp.eq.s32.totalorder %s19, 5
    %p93 = por %p91, %p92
    %p94 = scmp.ne.s32.totalorder %s85, %s86
    %p95 = scmp.eq.s32.totalorder %s19, 0
    %p96 = por %p94, %p95
    %p97 = scmp.ne.s32.totalorder %s85, %s86
    %p98 = scmp.eq.s32.totalorder %s20, 5
    %p99 = por %p97, %p98
    %p101 = scmp.ne.s32.totalorder %s86, %s100
    %p102 = scmp.eq.s32.totalorder %s20, 0
    %p103 = por %p101, %p102
    %s105 = sadd.s32 %s104, 1
    %p108 = scmp.eq.s32.totalorder %s14, 5
    %p109 = scmp.ne.s32.totalorder %s104, %s106
    %p110 = scmp.eq.s32.totalorder %s14, 0
    %p111 = por %p109, %p110
    %p112 = scmp.ne.s32.totalorder %s104, %s106
    %p113 = scmp.eq.s32.totalorder %s19, 5
    %p114 = por %p112, %p113
    %p115 = scmp.ne.s32.totalorder %s106, %s107
    %p116 = scmp.eq.s32.totalorder %s19, 0
    %p117 = por %p115, %p116
    %p118 = scmp.ne.s32.totalorder %s106, %s107
    %p119 = scmp.eq.s32.totalorder %s20, 5
    %p120 = por %p118, %p119
    %p122 = scmp.ne.s32.totalorder %s107, %s121
    %p123 = scmp.eq.s32.totalorder %s20, 0
    %p124 = por %p122, %p123
    %s126 = sadd.s32 %s125, 1
    %p129 = scmp.eq.s32.totalorder %s14, 5
    %p130 = scmp.ne.s32.totalorder %s125, %s127
    %p131 = scmp.eq.s32.totalorder %s14, 0
    %p132 = por %p130, %p131
    %p133 = scmp.ne.s32.totalorder %s125, %s127
    %p134 = scmp.eq.s32.totalorder %s19, 5
    %p135 = por %p133, %p134
    %p136 = scmp.ne.s32.totalorder %s127, %s128
    %p137 = scmp.eq.s32.totalorder %s19, 0
    %p138 = por %p136, %p137
    %p139 = scmp.ne.s32.totalorder %s127, %s128
    %p140 = scmp.eq.s32.totalorder %s20, 5
    %p141 = por %p139, %p140
    %p143 = scmp.ne.s32.totalorder %s128, %s142
    %p144 = scmp.eq.s32.totalorder %s20, 0
    %p145 = por %p143, %p144
    %s146 = ssub.s32 %s22, %s29
    %p147 = scmp.eq.s32.totalorder %s146, 0
    %s149 = sadd.s32 %s148, 1
    %s150 = scalar_select %p147, %s148, %s149
    %p153 = pneg %p147
    %p154 = scmp.eq.s32.totalorder %s14, 5
    %p155 = por %p153, %p154
    %p156 = scmp.ne.s32.totalorder %s148, %s151
    %p157 = scmp.eq.s32.totalorder %s14, 0
    %p158 = por %p156, %p157
    %p159 = scmp.ne.s32.totalorder %s148, %s151
    %p160 = scmp.eq.s32.totalorder %s19, 5
    %p161 = por %p159, %p160
    %p162 = scmp.ne.s32.totalorder %s151, %s152
    %p163 = scmp.eq.s32.totalorder %s19, 0
    %p164 = por %p162, %p163
    %p165 = scmp.ne.s32.totalorder %s151, %s152
    %p166 = scmp.eq.s32.totalorder %s20, 5
    %p167 = por %p165, %p166
    %p169 = scmp.ne.s32.totalorder %s152, %s168
    %p170 = scmp.eq.s32.totalorder %s20, 0
    %p171 = por %p169, %p170
    %s172 = ssub.s32 %s21, %s33
    %s173 = ssub.s32 %s22, %s29
    %s174 = sor.u32 %s172, %s173
    %p175 = scmp.eq.s32.totalorder %s174, 0
    %s177 = sadd.s32 %s176, 1
    %s178 = scalar_select %p175, %s176, %s177
    %p181 = pneg %p175
    %p182 = scmp.eq.s32.totalorder %s14, 5
    %p183 = por %p181, %p182
    %p184 = scmp.ne.s32.totalorder %s176, %s179
    %p185 = scmp.eq.s32.totalorder %s14, 0
    %p186 = por %p184, %p185
    %p187 = scmp.ne.s32.totalorder %s176, %s179
    %p188 = scmp.eq.s32.totalorder %s19, 5
    %p189 = por %p187, %p188
    %p190 = scmp.ne.s32.totalorder %s179, %s180
    %p191 = scmp.eq.s32.totalorder %s19, 0
    %p192 = por %p190, %p191
    %p193 = scmp.ne.s32.totalorder %s179, %s180
    %p194 = scmp.eq.s32.totalorder %s20, 5
    %p195 = por %p193, %p194
    %p197 = scmp.ne.s32.totalorder %s180, %s196
    %p198 = scmp.eq.s32.totalorder %s20, 0
    %p199 = por %p197, %p198
    %s200 = ssub.s32 %s21, %s33
    %s201 = ssub.s32 %s22, %s29
    %s202 = sor.u32 %s200, %s201
    %p203 = scmp.eq.s32.totalorder %s202, 0
    %s205 = sadd.s32 %s204, 1
    %s206 = scalar_select %p203, %s204, %s205
    %p209 = pneg %p203
    %p210 = scmp.eq.s32.totalorder %s14, 5
    %p211 = por %p209, %p210
    %p212 = scmp.ne.s32.totalorder %s204, %s207
    %p213 = scmp.eq.s32.totalorder %s14, 0
    %p214 = por %p212, %p213
    %p215 = scmp.ne.s32.totalorder %s204, %s207
    %p216 = scmp.eq.s32.totalorder %s19, 5
    %p217 = por %p215, %p216
    %p218 = scmp.ne.s32.totalorder %s207, %s208
    %p219 = scmp.eq.s32.totalorder %s19, 0
    %p220 = por %p218, %p219
    %p221 = scmp.ne.s32.totalorder %s207, %s208
    %p222 = scmp.eq.s32.totalorder %s20, 5
    %p223 = por %p221, %p222
    %p225 = scmp.ne.s32.totalorder %s208, %s224
    %p226 = scmp.eq.s32.totalorder %s20, 0
    %p227 = por %p225, %p226
    %p228 = scmp.le.s32.totalorder 1, %s14
    %p229 = scmp.lt.s32.totalorder %s14, 7
    %p230 = pnand %p228, %p229
    %p231 = pneg %p230
    // Predicated region
    $region9: #{gradcam_forward.1} parent=5 // pred_check
      _
    $region10: #{gradcam_forward.1} parent=5 // pred_check_branch
      %233 = sbr.rel (%p230) target = $region12
    $region11: #{gradcam_forward.1} parent=5 // pred_region
      %s234 = ssub.s32 %s14, 1
      // Predicated region
      $region13: #{gradcam_forward.1} parent=11 // pred_check
        %p235 = pneg %p75
      $region14: #{gradcam_forward.1} parent=11 // pred_check_branch
        %237 = sbr.rel (%p235) target = $region16
      $region15: #{gradcam_forward.1} parent=11 // pred_region
        _
      $region16: #{gradcam_forward.1} parent=11 // pred_fallthru
        _
      // Predicated region
      $region17: #{gradcam_forward.1} parent=11 // pred_check
        %p238 = pneg %p96
      $region18: #{gradcam_forward.1} parent=11 // pred_check_branch
        %240 = sbr.rel (%p238) target = $region20
      $region19: #{gradcam_forward.1} parent=11 // pred_region
        _
      $region20: #{gradcam_forward.1} parent=11 // pred_fallthru
        _
      // Predicated region
      $region21: #{gradcam_forward.1} parent=11 // pred_check
        %p241 = pneg %p117
      $region22: #{gradcam_forward.1} parent=11 // pred_check_branch
        %243 = sbr.rel (%p241) target = $region24
      $region23: #{gradcam_forward.1} parent=11 // pred_region
        _
      $region24: #{gradcam_forward.1} parent=11 // pred_fallthru
        _
      // Predicated region
      $region25: #{gradcam_forward.1} parent=11 // pred_check
        %p244 = pneg %p138
      $region26: #{gradcam_forward.1} parent=11 // pred_check_branch
        %246 = sbr.rel (%p244) target = $region28
      $region27: #{gradcam_forward.1} parent=11 // pred_region
        _
      $region28: #{gradcam_forward.1} parent=11 // pred_fallthru
        _
    $region12: #{gradcam_forward.1} parent=5 // pred_fallthru
      _
    %p247 = scmp.lt.s32.totalorder %s14, 6
    // Predicated region
    $region29: #{gradcam_forward.1} parent=5 // pred_check
      %p248 = pneg %p247
    $region30: #{gradcam_forward.1} parent=5 // pred_check_branch
      %250 = sbr.rel (%p248) target = $region32
    $region31: #{gradcam_forward.1} parent=5 // pred_region
      // Predicated region
      $region33: #{gradcam_forward.1} parent=31 // pred_check
        %p251 = pneg %p48
      $region34: #{gradcam_forward.1} parent=31 // pred_check_branch
        %253 = sbr.rel (%p251) target = $region36
      $region35: #{gradcam_forward.1} parent=31 // pred_region
        %p254 = scmp.lt.s32.totalorder %s21, 1
        %s255 = scalar_select %p254, %s21, 1
        %p256 = scmp.lt.s32.totalorder %s22, 2
        %s257 = scalar_select %p256, %s22, 2
        %s258 = smul.addr %s257, 2
        %s259 = smul.addr %s255, 6
        %s260 = sadd.s32 %s258, %s259
        %s261 = smul.addr %s260, 4
        %s262 = scalar_lea.vmem %s0, %s261
      $region36: #{gradcam_forward.1} parent=31 // pred_fallthru
        _
      // Predicated region
      $region37: #{gradcam_forward.1} parent=31 // pred_check
        %p263 = pneg %p158
      $region38: #{gradcam_forward.1} parent=31 // pred_check_branch
        %265 = sbr.rel (%p263) target = $region40
      $region39: #{gradcam_forward.1} parent=31 // pred_region
        %p266 = scmp.lt.s32.totalorder %s22, 2
        %s267 = scalar_select %p266, %s22, 2
        %s268 = scalar_lea.vmem %s5, %s267
      $region40: #{gradcam_forward.1} parent=31 // pred_fallthru
        _
    $region32: #{gradcam_forward.1} parent=5 // pred_fallthru
      _
    %p269 = scmp.le.s32.totalorder 1, %s14
    %p270 = scmp.lt.s32.totalorder %s14, 7
    %p271 = pnand %p269, %p270
    %p272 = pneg %p271
    // Predicated region
    $region41: #{gradcam_forward.1} parent=5 // pred_check
      _
    $region42: #{gradcam_forward.1} parent=5 // pred_check_branch
      %274 = sbr.rel (%p271) target = $region44
    $region43: #{gradcam_forward.1} parent=5 // pred_region
      %s275 = ssub.s32 %s14, 1
      %p276 = scmp.lt.s32.totalorder %s23, 1
      %s277 = scalar_select %p276, %s23, 1
      %p278 = scmp.lt.s32.totalorder %s24, 2
      %s279 = scalar_select %p278, %s24, 2
      %s280 = smul.addr %s279, 2
      %s281 = smul.addr %s277, 6
      %s282 = sadd.s32 %s280, %s281
      %s283 = smul.addr %s282, 4
      %s284 = scalar_lea.vmem %s0, %s283
      %p285 = pneg %p54
      %p286 = pneg %p51
      %p287 = pneg %p75
      %p288 = pneg %p72
      %p289 = pneg %p96
      %p290 = pneg %p93
      %p291 = pneg %p117
      %p292 = pneg %p114
      %p293 = pneg %p138
      %p294 = pneg %p135
      %p295 = scmp.lt.s32.totalorder %s24, 2
      %s296 = scalar_select %p295, %s24, 2
      %s297 = scalar_lea.vmem %s5, %s296
      %p298 = pneg %p164
      %p299 = pneg %p161
      %p300 = pneg %p192
      %p301 = pneg %p189
      %p302 = scmp.lt.s32.totalorder %s23, 1
      %s303 = scalar_select %p302, %s23, 1
      %p304 = scmp.lt.s32.totalorder %s24, 2
      %s305 = scalar_select %p304, %s24, 2
      %s306 = smul.addr %s303, 3
      %s307 = sadd.s32 %s305, %s306
      %s308 = smul.addr %s307, 8
      %s309 = scalar_lea.vmem %s6, %s308
      %p310 = pneg %p220
      %p311 = pneg %p217
      %p312 = scmp.lt.s32.totalorder %s23, 1
      %s313 = scalar_select %p312, %s23, 1
      %p314 = scmp.lt.s32.totalorder %s24, 2
      %s315 = scalar_select %p314, %s24, 2
      %s316 = smul.addr %s313, 3
      %s317 = sadd.s32 %s315, %s316
      %s318 = smul.addr %s317, 8
      %s319 = scalar_lea.vmem %s7, %s318
      %p320 = scmp.lt.s32.totalorder %s23, 1
      %s321 = scalar_select %p320, %s23, 1
      %p322 = scmp.lt.s32.totalorder %s24, 2
      %s323 = scalar_select %p322, %s24, 2
      %s324 = smul.addr %s323, 2
      %s325 = smul.addr %s321, 6
      %s326 = sadd.s32 %s324, %s325
      %s327 = smul.addr %s326, 4
      %s328 = scalar_lea.vmem %s0, %s327
      %p329 = scmp.lt.s32.totalorder %s24, 2
      %s330 = scalar_select %p329, %s24, 2
      %s331 = scalar_lea.vmem %s5, %s330
      %p332 = scmp.lt.s32.totalorder %s23, 1
      %s333 = scalar_select %p332, %s23, 1
      %p334 = scmp.lt.s32.totalorder %s24, 2
      %s335 = scalar_select %p334, %s24, 2
      %s336 = smul.addr %s333, 3
      %s337 = sadd.s32 %s335, %s336
      %s338 = smul.addr %s337, 8
      %s339 = scalar_lea.vmem %s6, %s338
      %p340 = scmp.lt.s32.totalorder %s23, 1
      %s341 = scalar_select %p340, %s23, 1
      %p342 = scmp.lt.s32.totalorder %s24, 2
      %s343 = scalar_select %p342, %s24, 2
      %s344 = smul.addr %s341, 3
      %s345 = sadd.s32 %s343, %s344
      %s346 = smul.addr %s345, 8
      %s347 = scalar_lea.vmem %s7, %s346
      %v348 = vld [vmem:[%s328] sm:$0xff]
      %v349 = vld [vmem:[%s1] sm:$0xff]
      %v351 = vcombine.high %v348, %v348
      %353 = vrot.lane.b32.xlu0 %v348, 127
      %v354 = vpop.permute.xlu0 %353
      %355 = vrot.lane.b32.xlu0 %v351, 127
      %v356 = vpop.permute.xlu0 %355
      %v357 = vlaneseq
      %v358 = vand.u32 %v357, 127
      %vm359 = vcmp.lt.s32.totalorder %v358, 127
      %v360 = vsel %vm359, %v354, %v356
      %s361 = scalar_lea.vmem %s1, 8
      %v362 = vld [vmem:[%s361] sm:$0xff]
      %vm363 = vcmask 31744
      %v365 = vsel %vm363, %v362, 0
      %vm367 = vcmask 1043456
      %v369 = vsel %vm367, %v360, 0
      %371 = vmatprep.subr.mxu0 0.0
      %372 = vmatpush1.msra.mxu0 0.0
      %373 = vmatprep.subr.mxu0 0.0
      %374 = vmatpush1.msra.mxu0 0.0
      %375 = vmatprep.subr.mxu0 0.0
      %376 = vmatpush1.msra.mxu0 0.0
      %377 = vmatprep.subr.mxu0 0.0
      %378 = vmatpush1.msra.mxu0 0.0
      %379 = vmatprep.subr.mxu0 0.0
      %380 = vmatpush1.msra.mxu0 0.0
      %381 = vmatprep.subr.mxu0 0.0
      %382 = vmatpush1.msra.mxu0 0.0
      %383 = vmatprep.subr.mxu0 0.0
      %384 = vmatpush1.msra.mxu0 0.0
      %385 = vmatprep.subr.mxu0 0.0
      %386 = vmatpush1.msra.mxu0 0.0
      %387 = vmatprep.subr.mxu0 0.0
      %388 = vmatpush1.msra.mxu0 0.0
      %389 = vmatprep.subr.mxu0 0.0
      %390 = vmatpush1.msra.mxu0 0.0
      %391 = vmatprep.subr.mxu0 0.0
      %392 = vmatpush1.msra.mxu0 0.0
      %393 = vmatprep.subr.mxu0 0.0
      %394 = vmatpush1.msra.mxu0 0.0
      %395 = vmatprep.subr.mxu0 0.0
      %396 = vmatpush1.msra.mxu0 0.0
      %397 = vmatprep.subr.mxu0 0.0
      %398 = vmatpush1.msra.mxu0 0.0
      %399 = vmatprep.subr.mxu0 0.0
      %400 = vmatpush1.msra.mxu0 0.0
      %401 = vmatprep.subr.mxu0 0.0
      %402 = vmatpush1.msra.mxu0 %v369
      %403 = vmatprep.subr.mxu0 0.0
      %404 = vmatpush2.msra.mxu0 0.0
      %405 = vmatprep.subr.mxu0 0.0
      %406 = vmatpush2.msra.mxu0 0.0
      %407 = vmatprep.subr.mxu0 0.0
      %408 = vmatpush2.msra.mxu0 0.0
      %409 = vmatprep.subr.mxu0 0.0
      %410 = vmatpush2.msra.mxu0 0.0
      %411 = vmatprep.subr.mxu0 0.0
      %412 = vmatpush2.msra.mxu0 0.0
      %413 = vmatprep.subr.mxu0 0.0
      %414 = vmatpush2.msra.mxu0 0.0
      %415 = vmatprep.subr.mxu0 0.0
      %416 = vmatpush2.msra.mxu0 0.0
      %417 = vmatprep.subr.mxu0 0.0
      %418 = vmatpush2.msra.mxu0 0.0
      %419 = vmatprep.subr.mxu0 0.0
      %420 = vmatpush2.msra.mxu0 0.0
      %421 = vmatprep.subr.mxu0 0.0
      %422 = vmatpush2.msra.mxu0 0.0
      %423 = vmatprep.subr.mxu0 0.0
      %424 = vmatpush2.msra.mxu0 0.0
      %425 = vmatprep.subr.mxu0 0.0
      %426 = vmatpush2.msra.mxu0 0.0
      %427 = vmatprep.subr.mxu0 0.0
      %428 = vmatpush2.msra.mxu0 0.0
      %429 = vmatprep.subr.mxu0 0.0
      %430 = vmatpush2.msra.mxu0 0.0
      %431 = vmatprep.subr.mxu0 0.0
      %432 = vmatpush2.msra.mxu0 0.0
      %433 = vmatprep.subr.mxu0 0.0
      %434 = vmatpush2.msra.mxu0 0.0
      %435 = vmatprep.mubr.f32.mxu0 0.0
      %436 = vmatmul.mubr.f32.gmra.mxu0 %v365
      %v437 = vpop.f32.mrf.mxu0
      %v438 = vadd.f32 0.0, %v437
      %v439 = vpop.f32.mrf.mxu0
      %440 = vdwg.mxu0
      %v442 = vsel %vm363, %v349, 0
      %v444 = vsel %vm367, %v348, 0
      %446 = vmatprep.subr.mxu0 0.0
      %447 = vmatpush1.msra.mxu0 0.0
      %448 = vmatprep.subr.mxu0 0.0
      %449 = vmatpush1.msra.mxu0 0.0
      %450 = vmatprep.subr.mxu0 0.0
      %451 = vmatpush1.msra.mxu0 0.0
      %452 = vmatprep.subr.mxu0 0.0
      %453 = vmatpush1.msra.mxu0 0.0
      %454 = vmatprep.subr.mxu0 0.0
      %455 = vmatpush1.msra.mxu0 0.0
      %456 = vmatprep.subr.mxu0 0.0
      %457 = vmatpush1.msra.mxu0 0.0
      %458 = vmatprep.subr.mxu0 0.0
      %459 = vmatpush1.msra.mxu0 0.0
      %460 = vmatprep.subr.mxu0 0.0
      %461 = vmatpush1.msra.mxu0 0.0
      %462 = vmatprep.subr.mxu0 0.0
      %463 = vmatpush1.msra.mxu0 0.0
      %464 = vmatprep.subr.mxu0 0.0
      %465 = vmatpush1.msra.mxu0 0.0
      %466 = vmatprep.subr.mxu0 0.0
      %467 = vmatpush1.msra.mxu0 0.0
      %468 = vmatprep.subr.mxu0 0.0
      %469 = vmatpush1.msra.mxu0 0.0
      %470 = vmatprep.subr.mxu0 0.0
      %471 = vmatpush1.msra.mxu0 0.0
      %472 = vmatprep.subr.mxu0 0.0
      %473 = vmatpush1.msra.mxu0 0.0
      %474 = vmatprep.subr.mxu0 0.0
      %475 = vmatpush1.msra.mxu0 0.0
      %476 = vmatprep.subr.mxu0 0.0
      %477 = vmatpush1.msra.mxu0 %v444
      %478 = vmatprep.subr.mxu0 0.0
      %479 = vmatpush2.msra.mxu0 0.0
      %480 = vmatprep.subr.mxu0 0.0
      %481 = vmatpush2.msra.mxu0 0.0
      %482 = vmatprep.subr.mxu0 0.0
      %483 = vmatpush2.msra.mxu0 0.0
      %484 = vmatprep.subr.mxu0 0.0
      %485 = vmatpush2.msra.mxu0 0.0
      %486 = vmatprep.subr.mxu0 0.0
      %487 = vmatpush2.msra.mxu0 0.0
      %488 = vmatprep.subr.mxu0 0.0
      %489 = vmatpush2.msra.mxu0 0.0
      %490 = vmatprep.subr.mxu0 0.0
      %491 = vmatpush2.msra.mxu0 0.0
      %492 = vmatprep.subr.mxu0 0.0
      %493 = vmatpush2.msra.mxu0 0.0
      %494 = vmatprep.subr.mxu0 0.0
      %495 = vmatpush2.msra.mxu0 0.0
      %496 = vmatprep.subr.mxu0 0.0
      %497 = vmatpush2.msra.mxu0 0.0
      %498 = vmatprep.subr.mxu0 0.0
      %499 = vmatpush2.msra.mxu0 0.0
      %500 = vmatprep.subr.mxu0 0.0
      %501 = vmatpush2.msra.mxu0 0.0
      %502 = vmatprep.subr.mxu0 0.0
      %503 = vmatpush2.msra.mxu0 0.0
      %504 = vmatprep.subr.mxu0 0.0
      %505 = vmatpush2.msra.mxu0 0.0
      %506 = vmatprep.subr.mxu0 0.0
      %507 = vmatpush2.msra.mxu0 0.0
      %508 = vmatprep.subr.mxu0 0.0
      %509 = vmatpush2.msra.mxu0 0.0
      %510 = vmatprep.mubr.f32.mxu0 0.0
      %511 = vmatmul.mubr.f32.gmra.mxu0 %v442
      %v512 = vpop.f32.mrf.mxu0
      %v513 = vadd.f32 %v438, %v512
      %v514 = vpop.f32.mrf.mxu0
      %515 = vdwg.mxu0
      %516 = vrot.lane.b32.xlu0 %v348, 126
      %v517 = vpop.permute.xlu0 %516
      %518 = vrot.lane.b32.xlu0 %v351, 126
      %v519 = vpop.permute.xlu0 %518
      %vm520 = vcmp.lt.s32.totalorder %v358, 126
      %v521 = vsel %vm520, %v517, %v519
      %s522 = scalar_lea.vmem %s1, 16
      %v523 = vld [vmem:[%s522] sm:$0xff]
      %v525 = vsel %vm363, %v523, 0
      %v528 = vsel %vm367, %v521, 0
      %530 = vmatprep.subr.mxu0 0.0
      %531 = vmatpush1.msra.mxu0 0.0
      %532 = vmatprep.subr.mxu0 0.0
      %533 = vmatpush1.msra.mxu0 0.0
      %534 = vmatprep.subr.mxu0 0.0
      %535 = vmatpush1.msra.mxu0 0.0
      %536 = vmatprep.subr.mxu0 0.0
      %537 = vmatpush1.msra.mxu0 0.0
      %538 = vmatprep.subr.mxu0 0.0
      %539 = vmatpush1.msra.mxu0 0.0
      %540 = vmatprep.subr.mxu0 0.0
      %541 = vmatpush1.msra.mxu0 0.0
      %542 = vmatprep.subr.mxu0 0.0
      %543 = vmatpush1.msra.mxu0 0.0
      %544 = vmatprep.subr.mxu0 0.0
      %545 = vmatpush1.msra.mxu0 0.0
      %546 = vmatprep.subr.mxu0 0.0
      %547 = vmatpush1.msra.mxu0 0.0
      %548 = vmatprep.subr.mxu0 0.0
      %549 = vmatpush1.msra.mxu0 0.0
      %550 = vmatprep.subr.mxu0 0.0
      %551 = vmatpush1.msra.mxu0 0.0
      %552 = vmatprep.subr.mxu0 0.0
      %553 = vmatpush1.msra.mxu0 0.0
      %554 = vmatprep.subr.mxu0 0.0
      %555 = vmatpush1.msra.mxu0 0.0
      %556 = vmatprep.subr.mxu0 0.0
      %557 = vmatpush1.msra.mxu0 0.0
      %558 = vmatprep.subr.mxu0 0.0
      %559 = vmatpush1.msra.mxu0 0.0
      %560 = vmatprep.subr.mxu0 0.0
      %561 = vmatpush1.msra.mxu0 %v528
      %562 = vmatprep.subr.mxu0 0.0
      %563 = vmatpush2.msra.mxu0 0.0
      %564 = vmatprep.subr.mxu0 0.0
      %565 = vmatpush2.msra.mxu0 0.0
      %566 = vmatprep.subr.mxu0 0.0
      %567 = vmatpush2.msra.mxu0 0.0
      %568 = vmatprep.subr.mxu0 0.0
      %569 = vmatpush2.msra.mxu0 0.0
      %570 = vmatprep.subr.mxu0 0.0
      %571 = vmatpush2.msra.mxu0 0.0
      %572 = vmatprep.subr.mxu0 0.0
      %573 = vmatpush2.msra.mxu0 0.0
      %574 = vmatprep.subr.mxu0 0.0
      %575 = vmatpush2.msra.mxu0 0.0
      %576 = vmatprep.subr.mxu0 0.0
      %577 = vmatpush2.msra.mxu0 0.0
      %578 = vmatprep.subr.mxu0 0.0
      %579 = vmatpush2.msra.mxu0 0.0
      %580 = vmatprep.subr.mxu0 0.0
      %581 = vmatpush2.msra.mxu0 0.0
      %582 = vmatprep.subr.mxu0 0.0
      %583 = vmatpush2.msra.mxu0 0.0
      %584 = vmatprep.subr.mxu0 0.0
      %585 = vmatpush2.msra.mxu0 0.0
      %586 = vmatprep.subr.mxu0 0.0
      %587 = vmatpush2.msra.mxu0 0.0
      %588 = vmatprep.subr.mxu0 0.0
      %589 = vmatpush2.msra.mxu0 0.0
      %590 = vmatprep.subr.mxu0 0.0
      %591 = vmatpush2.msra.mxu0 0.0
      %592 = vmatprep.subr.mxu0 0.0
      %593 = vmatpush2.msra.mxu0 0.0
      %594 = vmatprep.mubr.f32.mxu0 0.0
      %595 = vmatmul.mubr.f32.gmra.mxu0 %v525
      %v596 = vpop.f32.mrf.mxu0
      %v597 = vadd.f32 0.0, %v596
      %v598 = vpop.f32.mrf.mxu0
      %599 = vdwg.mxu0
      %v600 = vadd.f32 %v513, %v597
      %601 = vrot.lane.b32.xlu0 %v348, 110
      %v602 = vpop.permute.xlu0 %601
      %603 = vrot.lane.b32.xlu0 %v351, 110
      %v604 = vpop.permute.xlu0 %603
      %vm605 = vcmp.lt.s32.totalorder %v358, 110
      %v606 = vsel %vm605, %v602, %v604
      %s607 = scalar_lea.vmem %s1, 24
      %v608 = vld [vmem:[%s607] sm:$0xff]
      %v610 = vsel %vm363, %v608, 0
      %v613 = vsel %vm367, %v606, 0
      %615 = vmatprep.subr.mxu0 0.0
      %616 = vmatpush1.msra.mxu0 0.0
      %617 = vmatprep.subr.mxu0 0.0
      %618 = vmatpush1.msra.mxu0 0.0
      %619 = vmatprep.subr.mxu0 0.0
      %620 = vmatpush1.msra.mxu0 0.0
      %621 = vmatprep.subr.mxu0 0.0
      %622 = vmatpush1.msra.mxu0 0.0
      %623 = vmatprep.subr.mxu0 0.0
      %624 = vmatpush1.msra.mxu0 0.0
      %625 = vmatprep.subr.mxu0 0.0
      %626 = vmatpush1.msra.mxu0 0.0
      %627 = vmatprep.subr.mxu0 0.0
      %628 = vmatpush1.msra.mxu0 0.0
      %629 = vmatprep.subr.mxu0 0.0
      %630 = vmatpush1.msra.mxu0 0.0
      %631 = vmatprep.subr.mxu0 0.0
      %632 = vmatpush1.msra.mxu0 0.0
      %633 = vmatprep.subr.mxu0 0.0
      %634 = vmatpush1.msra.mxu0 0.0
      %635 = vmatprep.subr.mxu0 0.0
      %636 = vmatpush1.msra.mxu0 0.0
      %637 = vmatprep.subr.mxu0 0.0
      %638 = vmatpush1.msra.mxu0 0.0
      %639 = vmatprep.subr.mxu0 0.0
      %640 = vmatpush1.msra.mxu0 0.0
      %641 = vmatprep.subr.mxu0 0.0
      %642 = vmatpush1.msra.mxu0 0.0
      %643 = vmatprep.subr.mxu0 0.0
      %644 = vmatpush1.msra.mxu0 0.0
      %645 = vmatprep.subr.mxu0 0.0
      %646 = vmatpush1.msra.mxu0 %v613
      %647 = vmatprep.subr.mxu0 0.0
      %648 = vmatpush2.msra.mxu0 0.0
      %649 = vmatprep.subr.mxu0 0.0
      %650 = vmatpush2.msra.mxu0 0.0
      %651 = vmatprep.subr.mxu0 0.0
      %652 = vmatpush2.msra.mxu0 0.0
      %653 = vmatprep.subr.mxu0 0.0
      %654 = vmatpush2.msra.mxu0 0.0
      %655 = vmatprep.subr.mxu0 0.0
      %656 = vmatpush2.msra.mxu0 0.0
      %657 = vmatprep.subr.mxu0 0.0
      %658 = vmatpush2.msra.mxu0 0.0
      %659 = vmatprep.subr.mxu0 0.0
      %660 = vmatpush2.msra.mxu0 0.0
      %661 = vmatprep.subr.mxu0 0.0
      %662 = vmatpush2.msra.mxu0 0.0
      %663 = vmatprep.subr.mxu0 0.0
      %664 = vmatpush2.msra.mxu0 0.0
      %665 = vmatprep.subr.mxu0 0.0
      %666 = vmatpush2.msra.mxu0 0.0
      %667 = vmatprep.subr.mxu0 0.0
      %668 = vmatpush2.msra.mxu0 0.0
      %669 = vmatprep.subr.mxu0 0.0
      %670 = vmatpush2.msra.mxu0 0.0
      %671 = vmatprep.subr.mxu0 0.0
      %672 = vmatpush2.msra.mxu0 0.0
      %673 = vmatprep.subr.mxu0 0.0
      %674 = vmatpush2.msra.mxu0 0.0
      %675 = vmatprep.subr.mxu0 0.0
      %676 = vmatpush2.msra.mxu0 0.0
      %677 = vmatprep.subr.mxu0 0.0
      %678 = vmatpush2.msra.mxu0 0.0
      %679 = vmatprep.mubr.f32.mxu0 0.0
      %680 = vmatmul.mubr.f32.gmra.mxu0 %v610
      %v681 = vpop.f32.mrf.mxu0
      %v682 = vadd.f32 0.0, %v681
      %v683 = vpop.f32.mrf.mxu0
      %684 = vdwg.mxu0
      %v685 = vadd.f32 %v600, %v682
      %686 = vrot.lane.b32.xlu0 %v348, 109
      %v687 = vpop.permute.xlu0 %686
      %688 = vrot.lane.b32.xlu0 %v351, 109
      %v689 = vpop.permute.xlu0 %688
      %vm690 = vcmp.lt.s32.totalorder %v358, 109
      %v691 = vsel %vm690, %v687, %v689
      %s692 = scalar_lea.vmem %s1, 32
      %v693 = vld [vmem:[%s692] sm:$0xff]
      %v695 = vsel %vm363, %v693, 0
      %v698 = vsel %vm367, %v691, 0
      %700 = vmatprep.subr.mxu0 0.0
      %701 = vmatpush1.msra.mxu0 0.0
      %702 = vmatprep.subr.mxu0 0.0
      %703 = vmatpush1.msra.mxu0 0.0
      %704 = vmatprep.subr.mxu0 0.0
      %705 = vmatpush1.msra.mxu0 0.0
      %706 = vmatprep.subr.mxu0 0.0
      %707 = vmatpush1.msra.mxu0 0.0
      %708 = vmatprep.subr.mxu0 0.0
      %709 = vmatpush1.msra.mxu0 0.0
      %710 = vmatprep.subr.mxu0 0.0
      %711 = vmatpush1.msra.mxu0 0.0
      %712 = vmatprep.subr.mxu0 0.0
      %713 = vmatpush1.msra.mxu0 0.0
      %714 = vmatprep.subr.mxu0 0.0
      %715 = vmatpush1.msra.mxu0 0.0
      %716 = vmatprep.subr.mxu0 0.0
      %717 = vmatpush1.msra.mxu0 0.0
      %718 = vmatprep.subr.mxu0 0.0
      %719 = vmatpush1.msra.mxu0 0.0
      %720 = vmatprep.subr.mxu0 0.0
      %721 = vmatpush1.msra.mxu0 0.0
      %722 = vmatprep.subr.mxu0 0.0
      %723 = vmatpush1.msra.mxu0 0.0
      %724 = vmatprep.subr.mxu0 0.0
      %725 = vmatpush1.msra.mxu0 0.0
      %726 = vmatprep.subr.mxu0 0.0
      %727 = vmatpush1.msra.mxu0 0.0
      %728 = vmatprep.subr.mxu0 0.0
      %729 = vmatpush1.msra.mxu0 0.0
      %730 = vmatprep.subr.mxu0 0.0
      %731 = vmatpush1.msra.mxu0 %v698
      %732 = vmatprep.subr.mxu0 0.0
      %733 = vmatpush2.msra.mxu0 0.0
      %734 = vmatprep.subr.mxu0 0.0
      %735 = vmatpush2.msra.mxu0 0.0
      %736 = vmatprep.subr.mxu0 0.0
      %737 = vmatpush2.msra.mxu0 0.0
      %738 = vmatprep.subr.mxu0 0.0
      %739 = vmatpush2.msra.mxu0 0.0
      %740 = vmatprep.subr.mxu0 0.0
      %741 = vmatpush2.msra.mxu0 0.0
      %742 = vmatprep.subr.mxu0 0.0
      %743 = vmatpush2.msra.mxu0 0.0
      %744 = vmatprep.subr.mxu0 0.0
      %745 = vmatpush2.msra.mxu0 0.0
      %746 = vmatprep.subr.mxu0 0.0
      %747 = vmatpush2.msra.mxu0 0.0
      %748 = vmatprep.subr.mxu0 0.0
      %749 = vmatpush2.msra.mxu0 0.0
      %750 = vmatprep.subr.mxu0 0.0
      %751 = vmatpush2.msra.mxu0 0.0
      %752 = vmatprep.subr.mxu0 0.0
      %753 = vmatpush2.msra.mxu0 0.0
      %754 = vmatprep.subr.mxu0 0.0
      %755 = vmatpush2.msra.mxu0 0.0
      %756 = vmatprep.subr.mxu0 0.0
      %757 = vmatpush2.msra.mxu0 0.0
      %758 = vmatprep.subr.mxu0 0.0
      %759 = vmatpush2.msra.mxu0 0.0
      %760 = vmatprep.subr.mxu0 0.0
      %761 = vmatpush2.msra.mxu0 0.0
      %762 = vmatprep.subr.mxu0 0.0
      %763 = vmatpush2.msra.mxu0 0.0
      %764 = vmatprep.mubr.f32.mxu0 0.0
      %765 = vmatmul.mubr.f32.gmra.mxu0 %v695
      %v766 = vpop.f32.mrf.mxu0
      %v767 = vadd.f32 0.0, %v766
      %v768 = vpop.f32.mrf.mxu0
      %769 = vdwg.mxu0
      %v770 = vadd.f32 %v685, %v767
      %771 = vrot.lane.b32.xlu0 %v348, 108
      %v772 = vpop.permute.xlu0 %771
      %773 = vrot.lane.b32.xlu0 %v351, 108
      %v774 = vpop.permute.xlu0 %773
      %vm775 = vcmp.lt.s32.totalorder %v358, 108
      %v776 = vsel %vm775, %v772, %v774
      %s777 = scalar_lea.vmem %s1, 40
      %v778 = vld [vmem:[%s777] sm:$0xff]
      %v780 = vsel %vm363, %v778, 0
      %v783 = vsel %vm367, %v776, 0
      %785 = vmatprep.subr.mxu0 0.0
      %786 = vmatpush1.msra.mxu0 0.0
      %787 = vmatprep.subr.mxu0 0.0
      %788 = vmatpush1.msra.mxu0 0.0
      %789 = vmatprep.subr.mxu0 0.0
      %790 = vmatpush1.msra.mxu0 0.0
      %791 = vmatprep.subr.mxu0 0.0
      %792 = vmatpush1.msra.mxu0 0.0
      %793 = vmatprep.subr.mxu0 0.0
      %794 = vmatpush1.msra.mxu0 0.0
      %795 = vmatprep.subr.mxu0 0.0
      %796 = vmatpush1.msra.mxu0 0.0
      %797 = vmatprep.subr.mxu0 0.0
      %798 = vmatpush1.msra.mxu0 0.0
      %799 = vmatprep.subr.mxu0 0.0
      %800 = vmatpush1.msra.mxu0 0.0
      %801 = vmatprep.subr.mxu0 0.0
      %802 = vmatpush1.msra.mxu0 0.0
      %803 = vmatprep.subr.mxu0 0.0
      %804 = vmatpush1.msra.mxu0 0.0
      %805 = vmatprep.subr.mxu0 0.0
      %806 = vmatpush1.msra.mxu0 0.0
      %807 = vmatprep.subr.mxu0 0.0
      %808 = vmatpush1.msra.mxu0 0.0
      %809 = vmatprep.subr.mxu0 0.0
      %810 = vmatpush1.msra.mxu0 0.0
      %811 = vmatprep.subr.mxu0 0.0
      %812 = vmatpush1.msra.mxu0 0.0
      %813 = vmatprep.subr.mxu0 0.0
      %814 = vmatpush1.msra.mxu0 0.0
      %815 = vmatprep.subr.mxu0 0.0
      %816 = vmatpush1.msra.mxu0 %v783
      %817 = vmatprep.subr.mxu0 0.0
      %818 = vmatpush2.msra.mxu0 0.0
      %819 = vmatprep.subr.mxu0 0.0
      %820 = vmatpush2.msra.mxu0 0.0
      %821 = vmatprep.subr.mxu0 0.0
      %822 = vmatpush2.msra.mxu0 0.0
      %823 = vmatprep.subr.mxu0 0.0
      %824 = vmatpush2.msra.mxu0 0.0
      %825 = vmatprep.subr.mxu0 0.0
      %826 = vmatpush2.msra.mxu0 0.0
      %827 = vmatprep.subr.mxu0 0.0
      %828 = vmatpush2.msra.mxu0 0.0
      %829 = vmatprep.subr.mxu0 0.0
      %830 = vmatpush2.msra.mxu0 0.0
      %831 = vmatprep.subr.mxu0 0.0
      %832 = vmatpush2.msra.mxu0 0.0
      %833 = vmatprep.subr.mxu0 0.0
      %834 = vmatpush2.msra.mxu0 0.0
      %835 = vmatprep.subr.mxu0 0.0
      %836 = vmatpush2.msra.mxu0 0.0
      %837 = vmatprep.subr.mxu0 0.0
      %838 = vmatpush2.msra.mxu0 0.0
      %839 = vmatprep.subr.mxu0 0.0
      %840 = vmatpush2.msra.mxu0 0.0
      %841 = vmatprep.subr.mxu0 0.0
      %842 = vmatpush2.msra.mxu0 0.0
      %843 = vmatprep.subr.mxu0 0.0
      %844 = vmatpush2.msra.mxu0 0.0
      %845 = vmatprep.subr.mxu0 0.0
      %846 = vmatpush2.msra.mxu0 0.0
      %847 = vmatprep.subr.mxu0 0.0
      %848 = vmatpush2.msra.mxu0 0.0
      %849 = vmatprep.mubr.f32.mxu0 0.0
      %850 = vmatmul.mubr.f32.gmra.mxu0 %v780
      %v851 = vpop.f32.mrf.mxu0
      %v852 = vadd.f32 0.0, %v851
      %v853 = vpop.f32.mrf.mxu0
      %854 = vdwg.mxu0
      %v855 = vadd.f32 %v770, %v852
      %856 = vrot.lane.b32.xlu0 %v348, 92
      %v857 = vpop.permute.xlu0 %856
      %858 = vrot.lane.b32.xlu0 %v351, 92
      %v859 = vpop.permute.xlu0 %858
      %vm860 = vcmp.lt.s32.totalorder %v358, 92
      %v861 = vsel %vm860, %v857, %v859
      %s862 = scalar_lea.vmem %s1, 48
      %v863 = vld [vmem:[%s862] sm:$0xff]
      %v865 = vsel %vm363, %v863, 0
      %v868 = vsel %vm367, %v861, 0
      %870 = vmatprep.subr.mxu0 0.0
      %871 = vmatpush1.msra.mxu0 0.0
      %872 = vmatprep.subr.mxu0 0.0
      %873 = vmatpush1.msra.mxu0 0.0
      %874 = vmatprep.subr.mxu0 0.0
      %875 = vmatpush1.msra.mxu0 0.0
      %876 = vmatprep.subr.mxu0 0.0
      %877 = vmatpush1.msra.mxu0 0.0
      %878 = vmatprep.subr.mxu0 0.0
      %879 = vmatpush1.msra.mxu0 0.0
      %880 = vmatprep.subr.mxu0 0.0
      %881 = vmatpush1.msra.mxu0 0.0
      %882 = vmatprep.subr.mxu0 0.0
      %883 = vmatpush1.msra.mxu0 0.0
      %884 = vmatprep.subr.mxu0 0.0
      %885 = vmatpush1.msra.mxu0 0.0
      %886 = vmatprep.subr.mxu0 0.0
      %887 = vmatpush1.msra.mxu0 0.0
      %888 = vmatprep.subr.mxu0 0.0
      %889 = vmatpush1.msra.mxu0 0.0
      %890 = vmatprep.subr.mxu0 0.0
      %891 = vmatpush1.msra.mxu0 0.0
      %892 = vmatprep.subr.mxu0 0.0
      %893 = vmatpush1.msra.mxu0 0.0
      %894 = vmatprep.subr.mxu0 0.0
      %895 = vmatpush1.msra.mxu0 0.0
      %896 = vmatprep.subr.mxu0 0.0
      %897 = vmatpush1.msra.mxu0 0.0
      %898 = vmatprep.subr.mxu0 0.0
      %899 = vmatpush1.msra.mxu0 0.0
      %900 = vmatprep.subr.mxu0 0.0
      %901 = vmatpush1.msra.mxu0 %v868
      %902 = vmatprep.subr.mxu0 0.0
      %903 = vmatpush2.msra.mxu0 0.0
      %904 = vmatprep.subr.mxu0 0.0
      %905 = vmatpush2.msra.mxu0 0.0
      %906 = vmatprep.subr.mxu0 0.0
      %907 = vmatpush2.msra.mxu0 0.0
      %908 = vmatprep.subr.mxu0 0.0
      %909 = vmatpush2.msra.mxu0 0.0
      %910 = vmatprep.subr.mxu0 0.0
      %911 = vmatpush2.msra.mxu0 0.0
      %912 = vmatprep.subr.mxu0 0.0
      %913 = vmatpush2.msra.mxu0 0.0
      %914 = vmatprep.subr.mxu0 0.0
      %915 = vmatpush2.msra.mxu0 0.0
      %916 = vmatprep.subr.mxu0 0.0
      %917 = vmatpush2.msra.mxu0 0.0
      %918 = vmatprep.subr.mxu0 0.0
      %919 = vmatpush2.msra.mxu0 0.0
      %920 = vmatprep.subr.mxu0 0.0
      %921 = vmatpush2.msra.mxu0 0.0
      %922 = vmatprep.subr.mxu0 0.0
      %923 = vmatpush2.msra.mxu0 0.0
      %924 = vmatprep.subr.mxu0 0.0
      %925 = vmatpush2.msra.mxu0 0.0
      %926 = vmatprep.subr.mxu0 0.0
      %927 = vmatpush2.msra.mxu0 0.0
      %928 = vmatprep.subr.mxu0 0.0
      %929 = vmatpush2.msra.mxu0 0.0
      %930 = vmatprep.subr.mxu0 0.0
      %931 = vmatpush2.msra.mxu0 0.0
      %932 = vmatprep.subr.mxu0 0.0
      %933 = vmatpush2.msra.mxu0 0.0
      %934 = vmatprep.mubr.f32.mxu0 0.0
      %935 = vmatmul.mubr.f32.gmra.mxu0 %v865
      %v936 = vpop.f32.mrf.mxu0
      %v937 = vadd.f32 0.0, %v936
      %v938 = vpop.f32.mrf.mxu0
      %939 = vdwg.mxu0
      %v940 = vadd.f32 %v855, %v937
      %941 = vrot.lane.b32.xlu0 %v348, 91
      %v942 = vpop.permute.xlu0 %941
      %943 = vrot.lane.b32.xlu0 %v351, 91
      %v944 = vpop.permute.xlu0 %943
      %vm945 = vcmp.lt.s32.totalorder %v358, 91
      %v946 = vsel %vm945, %v942, %v944
      %s947 = scalar_lea.vmem %s1, 56
      %v948 = vld [vmem:[%s947] sm:$0xff]
      %v950 = vsel %vm363, %v948, 0
      %v953 = vsel %vm367, %v946, 0
      %955 = vmatprep.subr.mxu0 0.0
      %956 = vmatpush1.msra.mxu0 0.0
      %957 = vmatprep.subr.mxu0 0.0
      %958 = vmatpush1.msra.mxu0 0.0
      %959 = vmatprep.subr.mxu0 0.0
      %960 = vmatpush1.msra.mxu0 0.0
      %961 = vmatprep.subr.mxu0 0.0
      %962 = vmatpush1.msra.mxu0 0.0
      %963 = vmatprep.subr.mxu0 0.0
      %964 = vmatpush1.msra.mxu0 0.0
      %965 = vmatprep.subr.mxu0 0.0
      %966 = vmatpush1.msra.mxu0 0.0
      %967 = vmatprep.subr.mxu0 0.0
      %968 = vmatpush1.msra.mxu0 0.0
      %969 = vmatprep.subr.mxu0 0.0
      %970 = vmatpush1.msra.mxu0 0.0
      %971 = vmatprep.subr.mxu0 0.0
      %972 = vmatpush1.msra.mxu0 0.0
      %973 = vmatprep.subr.mxu0 0.0
      %974 = vmatpush1.msra.mxu0 0.0
      %975 = vmatprep.subr.mxu0 0.0
      %976 = vmatpush1.msra.mxu0 0.0
      %977 = vmatprep.subr.mxu0 0.0
      %978 = vmatpush1.msra.mxu0 0.0
      %979 = vmatprep.subr.mxu0 0.0
      %980 = vmatpush1.msra.mxu0 0.0
      %981 = vmatprep.subr.mxu0 0.0
      %982 = vmatpush1.msra.mxu0 0.0
      %983 = vmatprep.subr.mxu0 0.0
      %984 = vmatpush1.msra.mxu0 0.0
      %985 = vmatprep.subr.mxu0 0.0
      %986 = vmatpush1.msra.mxu0 %v953
      %987 = vmatprep.subr.mxu0 0.0
      %988 = vmatpush2.msra.mxu0 0.0
      %989 = vmatprep.subr.mxu0 0.0
      %990 = vmatpush2.msra.mxu0 0.0
      %991 = vmatprep.subr.mxu0 0.0
      %992 = vmatpush2.msra.mxu0 0.0
      %993 = vmatprep.subr.mxu0 0.0
      %994 = vmatpush2.msra.mxu0 0.0
      %995 = vmatprep.subr.mxu0 0.0
      %996 = vmatpush2.msra.mxu0 0.0
      %997 = vmatprep.subr.mxu0 0.0
      %998 = vmatpush2.msra.mxu0 0.0
      %999 = vmatprep.subr.mxu0 0.0
      %1000 = vmatpush2.msra.mxu0 0.0
      %1001 = vmatprep.subr.mxu0 0.0
      %1002 = vmatpush2.msra.mxu0 0.0
      %1003 = vmatprep.subr.mxu0 0.0
      %1004 = vmatpush2.msra.mxu0 0.0
      %1005 = vmatprep.subr.mxu0 0.0
      %1006 = vmatpush2.msra.mxu0 0.0
      %1007 = vmatprep.subr.mxu0 0.0
      %1008 = vmatpush2.msra.mxu0 0.0
      %1009 = vmatprep.subr.mxu0 0.0
      %1010 = vmatpush2.msra.mxu0 0.0
      %1011 = vmatprep.subr.mxu0 0.0
      %1012 = vmatpush2.msra.mxu0 0.0
      %1013 = vmatprep.subr.mxu0 0.0
      %1014 = vmatpush2.msra.mxu0 0.0
      %1015 = vmatprep.subr.mxu0 0.0
      %1016 = vmatpush2.msra.mxu0 0.0
      %1017 = vmatprep.subr.mxu0 0.0
      %1018 = vmatpush2.msra.mxu0 0.0
      %1019 = vmatprep.mubr.f32.mxu0 0.0
      %1020 = vmatmul.mubr.f32.gmra.mxu0 %v950
      %v1021 = vpop.f32.mrf.mxu0
      %v1022 = vadd.f32 0.0, %v1021
      %v1023 = vpop.f32.mrf.mxu0
      %1024 = vdwg.mxu0
      %v1025 = vadd.f32 %v940, %v1022
      %1026 = vrot.lane.b32.xlu0 %v348, 90
      %v1027 = vpop.permute.xlu0 %1026
      %1028 = vrot.lane.b32.xlu0 %v351, 90
      %v1029 = vpop.permute.xlu0 %1028
      %vm1030 = vcmp.lt.s32.totalorder %v358, 90
      %v1031 = vsel %vm1030, %v1027, %v1029
      %s1032 = scalar_lea.vmem %s1, 64
      %v1033 = vld [vmem:[%s1032] sm:$0xff]
      %v1035 = vsel %vm363, %v1033, 0
      %v1038 = vsel %vm367, %v1031, 0
      %1040 = vmatprep.subr.mxu0 0.0
      %1041 = vmatpush1.msra.mxu0 0.0
      %1042 = vmatprep.subr.mxu0 0.0
      %1043 = vmatpush1.msra.mxu0 0.0
      %1044 = vmatprep.subr.mxu0 0.0
      %1045 = vmatpush1.msra.mxu0 0.0
      %1046 = vmatprep.subr.mxu0 0.0
      %1047 = vmatpush1.msra.mxu0 0.0
      %1048 = vmatprep.subr.mxu0 0.0
      %1049 = vmatpush1.msra.mxu0 0.0
      %1050 = vmatprep.subr.mxu0 0.0
      %1051 = vmatpush1.msra.mxu0 0.0
      %1052 = vmatprep.subr.mxu0 0.0
      %1053 = vmatpush1.msra.mxu0 0.0
      %1054 = vmatprep.subr.mxu0 0.0
      %1055 = vmatpush1.msra.mxu0 0.0
      %1056 = vmatprep.subr.mxu0 0.0
      %1057 = vmatpush1.msra.mxu0 0.0
      %1058 = vmatprep.subr.mxu0 0.0
      %1059 = vmatpush1.msra.mxu0 0.0
      %1060 = vmatprep.subr.mxu0 0.0
      %1061 = vmatpush1.msra.mxu0 0.0
      %1062 = vmatprep.subr.mxu0 0.0
      %1063 = vmatpush1.msra.mxu0 0.0
      %1064 = vmatprep.subr.mxu0 0.0
      %1065 = vmatpush1.msra.mxu0 0.0
      %1066 = vmatprep.subr.mxu0 0.0
      %1067 = vmatpush1.msra.mxu0 0.0
      %1068 = vmatprep.subr.mxu0 0.0
      %1069 = vmatpush1.msra.mxu0 0.0
      %1070 = vmatprep.subr.mxu0 0.0
      %1071 = vmatpush1.msra.mxu0 %v1038
      %1072 = vmatprep.subr.mxu0 0.0
      %1073 = vmatpush2.msra.mxu0 0.0
      %1074 = vmatprep.subr.mxu0 0.0
      %1075 = vmatpush2.msra.mxu0 0.0
      %1076 = vmatprep.subr.mxu0 0.0
      %1077 = vmatpush2.msra.mxu0 0.0
      %1078 = vmatprep.subr.mxu0 0.0
      %1079 = vmatpush2.msra.mxu0 0.0
      %1080 = vmatprep.subr.mxu0 0.0
      %1081 = vmatpush2.msra.mxu0 0.0
      %1082 = vmatprep.subr.mxu0 0.0
      %1083 = vmatpush2.msra.mxu0 0.0
      %1084 = vmatprep.subr.mxu0 0.0
      %1085 = vmatpush2.msra.mxu0 0.0
      %1086 = vmatprep.subr.mxu0 0.0
      %1087 = vmatpush2.msra.mxu0 0.0
      %1088 = vmatprep.subr.mxu0 0.0
      %1089 = vmatpush2.msra.mxu0 0.0
      %1090 = vmatprep.subr.mxu0 0.0
      %1091 = vmatpush2.msra.mxu0 0.0
      %1092 = vmatprep.subr.mxu0 0.0
      %1093 = vmatpush2.msra.mxu0 0.0
      %1094 = vmatprep.subr.mxu0 0.0
      %1095 = vmatpush2.msra.mxu0 0.0
      %1096 = vmatprep.subr.mxu0 0.0
      %1097 = vmatpush2.msra.mxu0 0.0
      %1098 = vmatprep.subr.mxu0 0.0
      %1099 = vmatpush2.msra.mxu0 0.0
      %1100 = vmatprep.subr.mxu0 0.0
      %1101 = vmatpush2.msra.mxu0 0.0
      %1102 = vmatprep.subr.mxu0 0.0
      %1103 = vmatpush2.msra.mxu0 0.0
      %1104 = vmatprep.mubr.f32.mxu0 0.0
      %1105 = vmatmul.mubr.f32.gmra.mxu0 %v1035
      %v1106 = vpop.f32.mrf.mxu0
      %v1107 = vadd.f32 0.0, %v1106
      %v1108 = vpop.f32.mrf.mxu0
      %1109 = vdwg.mxu0
      %v1110 = vadd.f32 %v1025, %v1107
      %v1111 = vld [vmem:[%s2] sm:$0xff]
      %1113 = vset.pattern.permute.xlu0 0
      %1114 = vperm.xlu0 %1113, %v1111
      %v1115 = vpop.permute.xlu0 %1114
      %v1117 = vadd.f32 %v1110, %v1115
      %v1118 = vmax.f32 %v1117, 0.0
      %v1119 = vld [vmem:[%s3] sm:$0xff]
      %v1120 = vld [vmem:[%s4] sm:$0xff]
      %1122 = vset.pattern.permute.xlu0 0
      %1123 = vperm.xlu0 %1122, %v1120
      %v1124 = vpop.permute.xlu0 %1123
      %vm1126 = vcmask 64512
      %v1128 = vsel %vm1126, %v1119, 0
      %1130 = vmatprep.subr.mxu0 0.0
      %1131 = vmatpush1.msra.mxu0 0.0
      %1132 = vmatprep.subr.mxu0 0.0
      %1133 = vmatpush1.msra.mxu0 0.0
      %1134 = vmatprep.subr.mxu0 0.0
      %1135 = vmatpush1.msra.mxu0 0.0
      %1136 = vmatprep.subr.mxu0 0.0
      %1137 = vmatpush1.msra.mxu0 0.0
      %1138 = vmatprep.subr.mxu0 0.0
      %1139 = vmatpush1.msra.mxu0 0.0
      %1140 = vmatprep.subr.mxu0 0.0
      %1141 = vmatpush1.msra.mxu0 0.0
      %1142 = vmatprep.subr.mxu0 0.0
      %1143 = vmatpush1.msra.mxu0 0.0
      %1144 = vmatprep.subr.mxu0 0.0
      %1145 = vmatpush1.msra.mxu0 0.0
      %1146 = vmatprep.subr.mxu0 0.0
      %1147 = vmatpush1.msra.mxu0 0.0
      %1148 = vmatprep.subr.mxu0 0.0
      %1149 = vmatpush1.msra.mxu0 0.0
      %1150 = vmatprep.subr.mxu0 0.0
      %1151 = vmatpush1.msra.mxu0 0.0
      %1152 = vmatprep.subr.mxu0 0.0
      %1153 = vmatpush1.msra.mxu0 0.0
      %1154 = vmatprep.subr.mxu0 0.0
      %1155 = vmatpush1.msra.mxu0 0.0
      %1156 = vmatprep.subr.mxu0 0.0
      %1157 = vmatpush1.msra.mxu0 0.0
      %1158 = vmatprep.subr.mxu0 0.0
      %1159 = vmatpush1.msra.mxu0 0.0
      %1160 = vmatprep.subr.mxu0 0.0
      %1161 = vmatpush1.msra.mxu0 %v1118
      %1162 = vmatprep.subr.mxu0 0.0
      %1163 = vmatpush2.msra.mxu0 0.0
      %1164 = vmatprep.subr.mxu0 0.0
      %1165 = vmatpush2.msra.mxu0 0.0
      %1166 = vmatprep.subr.mxu0 0.0
      %1167 = vmatpush2.msra.mxu0 0.0
      %1168 = vmatprep.subr.mxu0 0.0
      %1169 = vmatpush2.msra.mxu0 0.0
      %1170 = vmatprep.subr.mxu0 0.0
      %1171 = vmatpush2.msra.mxu0 0.0
      %1172 = vmatprep.subr.mxu0 0.0
      %1173 = vmatpush2.msra.mxu0 0.0
      %1174 = vmatprep.subr.mxu0 0.0
      %1175 = vmatpush2.msra.mxu0 0.0
      %1176 = vmatprep.subr.mxu0 0.0
      %1177 = vmatpush2.msra.mxu0 0.0
      %1178 = vmatprep.subr.mxu0 0.0
      %1179 = vmatpush2.msra.mxu0 0.0
      %1180 = vmatprep.subr.mxu0 0.0
      %1181 = vmatpush2.msra.mxu0 0.0
      %1182 = vmatprep.subr.mxu0 0.0
      %1183 = vmatpush2.msra.mxu0 0.0
      %1184 = vmatprep.subr.mxu0 0.0
      %1185 = vmatpush2.msra.mxu0 0.0
      %1186 = vmatprep.subr.mxu0 0.0
      %1187 = vmatpush2.msra.mxu0 0.0
      %1188 = vmatprep.subr.mxu0 0.0
      %1189 = vmatpush2.msra.mxu0 0.0
      %1190 = vmatprep.subr.mxu0 0.0
      %1191 = vmatpush2.msra.mxu0 0.0
      %1192 = vmatprep.subr.mxu0 0.0
      %1193 = vmatpush2.msra.mxu0 0.0
      %1194 = vmatprep.mubr.f32.mxu0 0.0
      %1195 = vmatmul.mubr.f32.gmra.mxu0 %v1128
      %v1196 = vpop.f32.mrf.mxu0
      %v1197 = vadd.f32 %v1124, %v1196
      %v1198 = vpop.f32.mrf.mxu0
      %1199 = vdwg.mxu0
      %1200 = vst [vmem:[%s347] sm:$0xff] %v1197
      %v1201 = vld [vmem:[%s331] sm:$0x1]
      %v1203 = vlaneseq
      %v1204 = vshrl.u32 %v1203, 7
      %v1205 = vsub.s32 0, %v1204
      %v1206 = vrot.slane %v1201, %v1205
      %v1208 = vadd.f32 %v1197, %v1206
      %1209 = vmax.xlane.f32.xlu0 %v1208
      %v1210 = vpop.xlane.xlu0 %1209
      %vm1211 = vcmask 7168
      %1212 = vst.msk [vmem:[%s339] sm:$0xff] %vm1211, %v1210
      %p1213 = scmp.lt.s32.totalorder %s23, 1
      %s1214 = scalar_select %p1213, %s23, 1
      %p1215 = scmp.lt.s32.totalorder %s24, 2
      %s1216 = scalar_select %p1215, %s24, 2
      %s1217 = smul.addr %s1214, 3
      %s1218 = sadd.s32 %s1216, %s1217
      %s1219 = smul.addr %s1218, 8
      %s1220 = scalar_lea.vmem %s6, %s1219
      %p1221 = scmp.lt.s32.totalorder %s23, 1
      %s1222 = scalar_select %p1221, %s23, 1
      %p1223 = scmp.lt.s32.totalorder %s24, 2
      %s1224 = scalar_select %p1223, %s24, 2
      %s1225 = smul.addr %s1222, 3
      %s1226 = sadd.s32 %s1224, %s1225
      %s1227 = smul.addr %s1226, 8
      %s1228 = scalar_lea.vmem %s7, %s1227
      // Predicated region
      $region45: #{gradcam_forward.1} parent=43 // pred_check
        %p1229 = pneg %p189
      $region46: #{gradcam_forward.1} parent=43 // pred_check_branch
        %1231 = sbr.rel (%p1229) target = $region48
      $region47: #{gradcam_forward.1} parent=43 // pred_region
        _
      $region48: #{gradcam_forward.1} parent=43 // pred_fallthru
        _
      // Predicated region
      $region49: #{gradcam_forward.1} parent=43 // pred_check
        %p1232 = pneg %p217
      $region50: #{gradcam_forward.1} parent=43 // pred_check_branch
        %1234 = sbr.rel (%p1232) target = $region52
      $region51: #{gradcam_forward.1} parent=43 // pred_region
        _
      $region52: #{gradcam_forward.1} parent=43 // pred_fallthru
        _
    $region44: #{gradcam_forward.1} parent=5 // pred_fallthru
      _
    %p1235 = scmp.le.s32.totalorder 2, %s14
    // Predicated region
    $region53: #{gradcam_forward.1} parent=5 // pred_check
      %p1236 = pneg %p1235
    $region54: #{gradcam_forward.1} parent=5 // pred_check_branch
      %1238 = sbr.rel (%p1236) target = $region56
    $region55: #{gradcam_forward.1} parent=5 // pred_region
      %s1239 = ssub.s32 %s14, 2
      // Predicated region
      $region57: #{gradcam_forward.1} parent=55 // pred_check
        %p1240 = pneg %p195
      $region58: #{gradcam_forward.1} parent=55 // pred_check_branch
        %1242 = sbr.rel (%p1240) target = $region60
      $region59: #{gradcam_forward.1} parent=55 // pred_region
        %p1243 = scmp.lt.s32.totalorder %s25, 1
        %s1244 = scalar_select %p1243, %s25, 1
        %p1245 = scmp.lt.s32.totalorder %s26, 2
        %s1246 = scalar_select %p1245, %s26, 2
        %s1247 = smul.addr %s1244, 3
        %s1248 = sadd.s32 %s1246, %s1247
        %s1249 = smul.addr %s1248, 8
        %s1250 = scalar_lea.vmem %s6, %s1249
      $region60: #{gradcam_forward.1} parent=55 // pred_fallthru
        _
      // Predicated region
      $region61: #{gradcam_forward.1} parent=55 // pred_check
        %p1251 = pneg %p223
      $region62: #{gradcam_forward.1} parent=55 // pred_check_branch
        %1253 = sbr.rel (%p1251) target = $region64
      $region63: #{gradcam_forward.1} parent=55 // pred_region
        %p1254 = scmp.lt.s32.totalorder %s25, 1
        %s1255 = scalar_select %p1254, %s25, 1
        %p1256 = scmp.lt.s32.totalorder %s26, 2
        %s1257 = scalar_select %p1256, %s26, 2
        %s1258 = smul.addr %s1255, 3
        %s1259 = sadd.s32 %s1257, %s1258
        %s1260 = smul.addr %s1259, 8
        %s1261 = scalar_lea.vmem %s7, %s1260
      $region64: #{gradcam_forward.1} parent=55 // pred_fallthru
        _
    $region56: #{gradcam_forward.1} parent=5 // pred_fallthru
      _
  $region6: #{gradcam_forward.1} parent=0 // loop_footer
    %s18 = sadd.s32 1, %s14
  $region7: #{gradcam_forward.1} parent=0 // loop_footer_branch
    %13 = sbr.rel target = $region3
  $region8: #{gradcam_forward.1} parent=0 // loop_exit
    _

</llo_original>
